<compile_context>
chip_gen: v6e
topology: v6e:2x2x1
jax: 0.10.0
libtpu: 0.0.40
codegen_flags: <defaults>
</compile_context>

<pallas_src>
import functools

import jax
import jax.numpy as jnp
from jax.experimental import pallas as pl
from jax.experimental.pallas import tpu as pltpu

# Conservative scoped-VMEM budget that is valid on v5e / v6e / v7x (v7x default is 32 MiB).
_VMEM_LIMIT = 32 * 1024 * 1024


# ---------------------------------------------------------------------------
# Kernel 1: simple_nms (iterated (2r+1)^2 max-pool NMS) + DKD border zeroing.
# One (H, W) score map per grid step.
# ---------------------------------------------------------------------------
def _nms_kernel(s_ref, o_ref, *, nms_radius, border_radius):
    x = s_ref[0]                                   # (H, W) scores of one image
    h, w = x.shape
    neg = jnp.float32(-jnp.inf)

    def _axis_max(v, axis, size):
        # running max over offsets -r..r along `axis`; out-of-range neighbours are -inf
        # (torch's max_pool2d pads with -inf), implemented with XLU rolls + iota masks.
        pos = jax.lax.broadcasted_iota(jnp.int32, v.shape, axis)
        out = v
        for d in range(1, nms_radius + 1):
            fwd = jnp.where(pos + d < size, pltpu.roll(v, shift=size - d, axis=axis), neg)
            bwd = jnp.where(pos - d >= 0, pltpu.roll(v, shift=d, axis=axis), neg)
            out = jnp.maximum(out, jnp.maximum(fwd, bwd))
        return out

    def max_pool(v):                               # separable (2r+1)x(2r+1), stride 1, pad r
        return _axis_max(_axis_max(v, 1, w), 0, h)

    # simple_nms(scores, nms_radius)
    max_mask = x == max_pool(x)
    for _ in range(2):
        supp_mask = max_pool(max_mask.astype(jnp.float32)) > 0.0
        supp_scores = jnp.where(supp_mask, 0.0, x)
        new_max_mask = supp_scores == max_pool(supp_scores)
        max_mask = max_mask | (new_max_mask & jnp.logical_not(supp_mask))
    nms = jnp.where(max_mask, x, 0.0)

    # DKD border suppression: rows/cols [0, radius] and [dim - radius, dim) -> 0.
    row = jax.lax.broadcasted_iota(jnp.int32, (h, w), 0)
    col = jax.lax.broadcasted_iota(jnp.int32, (h, w), 1)
    keep = ((row >= border_radius + 1) & (row < h - border_radius)
            & (col >= border_radius + 1) & (col < w - border_radius))
    o_ref[0] = jnp.where(keep, nms, 0.0)


def _simple_nms_borders(scores_bhw, *, nms_radius, border_radius):
    b, h, w = scores_bhw.shape
    kern = functools.partial(_nms_kernel, nms_radius=nms_radius, border_radius=border_radius)
    return pl.pallas_call(
        kern,
        out_shape=jax.ShapeDtypeStruct((b, h, w), jnp.float32),
        grid=(b,),
        in_specs=[pl.BlockSpec((1, h, w), lambda i: (i, 0, 0))],
        out_specs=pl.BlockSpec((1, h, w), lambda i: (i, 0, 0)),
        compiler_params=pltpu.CompilerParams(
            dimension_semantics=("parallel",),
            vmem_limit_bytes=_VMEM_LIMIT,
        ),
    )(scores_bhw)


# ---------------------------------------------------------------------------
# Kernel 2: descriptor gather at keypoint indices + per-keypoint L2 normalisation.
# Keypoint indices are scalar-prefetched into SMEM; the (H*W, C) descriptor slab of
# the current image stays resident in VMEM while rows are gathered.
# ---------------------------------------------------------------------------
def _desc_gather_kernel(idx_ref, desc_ref, out_ref):
    # idx_ref : SMEM (B, K) int32 flat spatial indices (scalar prefetch)
    # desc_ref: VMEM (1, H*W, C) descriptors of image b (NHWC, flattened spatially)
    # out_ref : VMEM (1, K, C) L2-normalised sampled descriptors
    b = pl.program_id(0)
    k = out_ref.shape[1]

    def body(j, carry):
        idx = idx_ref[b, j]
        row = desc_ref[0, pl.ds(idx, 1), :]                     # (1, C)
        ss = jnp.sum(row * row, axis=1, keepdims=True)          # (1, 1)
        # F.normalize(..., p=2, dim=channels, eps=1e-12): x / max(||x||, 1e-12)
        inv = jax.lax.rsqrt(jnp.maximum(ss, 1e-24))
        out_ref[0, pl.ds(j, 1), :] = row * inv
        return carry

    jax.lax.fori_loop(0, k, body, 0)


def _sample_descriptors(desc_flat, indices):
    b, hw, c = desc_flat.shape
    k = indices.shape[1]
    return pl.pallas_call(
        _desc_gather_kernel,
        out_shape=jax.ShapeDtypeStruct((b, k, c), jnp.float32),
        grid_spec=pltpu.PrefetchScalarGridSpec(
            num_scalar_prefetch=1,
            grid=(b,),
            in_specs=[pl.BlockSpec((1, hw, c), lambda i, idx: (i, 0, 0))],
            out_specs=pl.BlockSpec((1, k, c), lambda i, idx: (i, 0, 0)),
        ),
        compiler_params=pltpu.CompilerParams(
            dimension_semantics=("parallel",),
            vmem_limit_bytes=_VMEM_LIMIT,
        ),
    )(indices.astype(jnp.int32), desc_flat)


# ---------------------------------------------------------------------------
# DKD forward (fixed-shape port)
# ---------------------------------------------------------------------------
def dkd_forward(scores_map, descriptor_map, *, radius=2, top_k=0, scores_th=0.2,
                n_limit=20000, max_kpts=128, sub_pixel=False):
    """Fixed-shape port of DKD.forward (default sub_pixel=False path).

    Returns (keypoints, descriptors, kptscores, scoredispersitys, num_valid):
      keypoints     (B, K, 2) normalised xy in [-1, 1]   (padded rows zeroed)
      descriptors   (B, K, C) per-keypoint L2-normalised (padded rows zeroed)
      kptscores     (B, K)    score-map value at each keypoint
      scoredispersitys        None (as in the torch module for sub_pixel=False)
      num_valid     (B,)      number of real keypoints per image
    """
    if sub_pixel:
        # TODO(synk): sub_pixel=True soft-argmax refinement not implemented.
        raise NotImplementedError("sub_pixel=True path not implemented")

    b, c1, h, w = scores_map.shape
    assert c1 == 1, "scores_map must be (B, 1, H, W)"
    c = descriptor_map.shape[1]

    scores_bhw = scores_map.reshape(b, h, w).astype(jnp.float32)
    # simple_nms uses a hard-coded radius of 2 in DKD.detect_keypoints; the border
    # suppression uses self.radius.
    nms = _simple_nms_borders(scores_bhw, nms_radius=2, border_radius=radius)

    flat_nms = nms.reshape(b, h * w)
    flat_scores = scores_bhw.reshape(b, h * w)

    if top_k > 0:
        k = top_k
        _, topi = jax.lax.top_k(flat_nms, k)
        valid = jnp.ones((b, k), dtype=bool)
    else:
        k = min(max_kpts, n_limit)
        if scores_th > 0:
            masks = flat_nms > scores_th
            fallback = flat_nms > jnp.mean(flat_scores, axis=1, keepdims=True)
            masks = jnp.where(jnp.sum(masks) > 0, masks, fallback)
        else:
            masks = flat_nms > jnp.mean(flat_scores, axis=1, keepdims=True)
        sel = jnp.where(masks, flat_nms, -jnp.inf)
        topv, topi = jax.lax.top_k(sel, k)
        valid = topv > -jnp.inf

    topi = topi.astype(jnp.int32)
    kx = (topi % w).astype(jnp.float32) / (w - 1) * 2.0 - 1.0
    ky = (topi // w).astype(jnp.float32) / (h - 1) * 2.0 - 1.0
    keypoints = jnp.stack([kx, ky], axis=-1)                      # (B, K, 2)

    # grid_sample(bilinear, align_corners=True) at coordinates that map back exactly to
    # integer pixels == direct lookup of the score map.
    kptscores = jnp.take_along_axis(flat_scores, topi, axis=1)    # (B, K)

    # sample_descriptor(..., bilinear_interp=False): nearest lookup + per-keypoint L2 norm.
    desc_flat = jnp.transpose(descriptor_map, (0, 2, 3, 1)).reshape(b, h * w, c)
    descriptors = _sample_descriptors(desc_flat.astype(jnp.float32), topi)   # (B, K, C)

    vf = valid.astype(jnp.float32)
    keypoints = keypoints * vf[..., None]
    kptscores = kptscores * vf
    descriptors = descriptors * vf[..., None]
    num_valid = jnp.sum(valid, axis=1).astype(jnp.int32)
    scoredispersitys = None
    return keypoints, descriptors, kptscores, scoredispersitys, num_valid


if __name__ == "__main__":
    key = jax.random.PRNGKey(0)
    k_s, k_d = jax.random.split(key)
    B, C, H, W = 2, 128, 32, 32
    # score maps in (0, 1) like ALIKE's score head; dense BxCxHxW descriptor map.
    scores_map = jax.nn.sigmoid(jax.random.normal(k_s, (B, 1, H, W), jnp.float32))
    descriptor_map = jax.random.normal(k_d, (B, C, H, W), jnp.float32)

    fwd = jax.jit(dkd_forward)
    keypoints, descriptors, kptscores, scoredispersitys, num_valid = fwd(scores_map,
                                                                         descriptor_map)
    keypoints, descriptors, kptscores, num_valid = jax.block_until_ready(
        (keypoints, descriptors, kptscores, num_valid))

    K = keypoints.shape[1]
    assert keypoints.shape == (B, K, 2), keypoints.shape
    assert descriptors.shape == (B, K, C), descriptors.shape
    assert kptscores.shape == (B, K), kptscores.shape
    assert bool(jnp.all(num_valid > 0)), num_valid

    valid = jnp.arange(K)[None, :] < num_valid[:, None]
    # valid keypoints lie in [-1, 1]
    assert bool(jnp.all(jnp.abs(keypoints) <= 1.0 + 1e-6))
    # valid descriptors are unit-norm after the fused L2 normalisation
    norms = jnp.linalg.norm(descriptors, axis=-1)
    assert bool(jnp.all(jnp.where(valid, jnp.abs(norms - 1.0), 0.0) < 1e-3))
    # selected keypoints passed the detection threshold (scores_th = 0.2)
    assert bool(jnp.all(jnp.where(valid, kptscores, 1.0) > 0.2))
    print("KERNEL_OK")
</pallas_src>

<mosaic_0001>
module attributes {stable_mosaic.version = 11 : i64} {
  func.func @_nms_kernel(%arg0: i32, %arg1: memref<1x32x32xf32, #tpu.memory_space<vmem>>, %arg2: memref<1x32x32xf32, #tpu.memory_space<vmem>>) attributes {dimension_semantics = [#tpu.dimension_semantics<parallel>], iteration_bounds = array<i64: 2>, scalar_prefetch = 0 : i64, scratch_operands = 0 : i64, tpu.core_type = #tpu.core_type<tc>, window_params = [{transform_indices = @transform_0, window_bounds = array<i64: 1, 32, 32>}, {transform_indices = @transform_1, window_bounds = array<i64: 1, 32, 32>}]} {
    %c0 = arith.constant 0 : index
    %c0_0 = arith.constant 0 : index
    %c0_1 = arith.constant 0 : index
    %0 = vector.load %arg1[%c0, %c0_0, %c0_1] : memref<1x32x32xf32, #tpu.memory_space<vmem>>, vector<1x32x32xf32>
    %1 = vector.shape_cast %0 : vector<1x32x32xf32> to vector<32x32xf32>
    %2 = tpu.iota {dimensions = array<i32: 1>} : vector<32x32xi32>
    %c1_i32 = arith.constant 1 : i32
    %3 = vector.broadcast %c1_i32 : i32 to vector<32x32xi32>
    %4 = arith.addi %2, %3 : vector<32x32xi32>
    %c32_i32 = arith.constant 32 : i32
    %5 = vector.broadcast %c32_i32 : i32 to vector<32x32xi32>
    %6 = arith.cmpi slt, %4, %5 : vector<32x32xi32>
    %c31_i32 = arith.constant 31 : i32
    %7 = tpu.dynamic_rotate %1 by %c31_i32 dim 1 : vector<32x32xf32>, i32 -> vector<32x32xf32>
    %cst = arith.constant 0xFF800000 : f32
    %8 = vector.broadcast %cst : f32 to vector<32x32xf32>
    %9 = arith.select %6, %7, %8 : vector<32x32xi1>, vector<32x32xf32>
    %c1_i32_2 = arith.constant 1 : i32
    %10 = vector.broadcast %c1_i32_2 : i32 to vector<32x32xi32>
    %11 = arith.subi %2, %10 : vector<32x32xi32>
    %c0_i32 = arith.constant 0 : i32
    %12 = vector.broadcast %c0_i32 : i32 to vector<32x32xi32>
    %13 = arith.cmpi sge, %11, %12 : vector<32x32xi32>
    %c1_i32_3 = arith.constant 1 : i32
    %14 = tpu.dynamic_rotate %1 by %c1_i32_3 dim 1 : vector<32x32xf32>, i32 -> vector<32x32xf32>
    %cst_4 = arith.constant 0xFF800000 : f32
    %15 = vector.broadcast %cst_4 : f32 to vector<32x32xf32>
    %16 = arith.select %13, %14, %15 : vector<32x32xi1>, vector<32x32xf32>
    %17 = arith.maximumf %9, %16 : vector<32x32xf32>
    %18 = arith.maximumf %1, %17 : vector<32x32xf32>
    %c2_i32 = arith.constant 2 : i32
    %19 = vector.broadcast %c2_i32 : i32 to vector<32x32xi32>
    %20 = arith.addi %2, %19 : vector<32x32xi32>
    %c32_i32_5 = arith.constant 32 : i32
    %21 = vector.broadcast %c32_i32_5 : i32 to vector<32x32xi32>
    %22 = arith.cmpi slt, %20, %21 : vector<32x32xi32>
    %c30_i32 = arith.constant 30 : i32
    %23 = tpu.dynamic_rotate %1 by %c30_i32 dim 1 : vector<32x32xf32>, i32 -> vector<32x32xf32>
    %cst_6 = arith.constant 0xFF800000 : f32
    %24 = vector.broadcast %cst_6 : f32 to vector<32x32xf32>
    %25 = arith.select %22, %23, %24 : vector<32x32xi1>, vector<32x32xf32>
    %c2_i32_7 = arith.constant 2 : i32
    %26 = vector.broadcast %c2_i32_7 : i32 to vector<32x32xi32>
    %27 = arith.subi %2, %26 : vector<32x32xi32>
    %c0_i32_8 = arith.constant 0 : i32
    %28 = vector.broadcast %c0_i32_8 : i32 to vector<32x32xi32>
    %29 = arith.cmpi sge, %27, %28 : vector<32x32xi32>
    %c2_i32_9 = arith.constant 2 : i32
    %30 = tpu.dynamic_rotate %1 by %c2_i32_9 dim 1 : vector<32x32xf32>, i32 -> vector<32x32xf32>
    %cst_10 = arith.constant 0xFF800000 : f32
    %31 = vector.broadcast %cst_10 : f32 to vector<32x32xf32>
    %32 = arith.select %29, %30, %31 : vector<32x32xi1>, vector<32x32xf32>
    %33 = arith.maximumf %25, %32 : vector<32x32xf32>
    %34 = arith.maximumf %18, %33 : vector<32x32xf32>
    %35 = tpu.iota {dimensions = array<i32: 0>} : vector<32x32xi32>
    %c1_i32_11 = arith.constant 1 : i32
    %36 = vector.broadcast %c1_i32_11 : i32 to vector<32x32xi32>
    %37 = arith.addi %35, %36 : vector<32x32xi32>
    %c32_i32_12 = arith.constant 32 : i32
    %38 = vector.broadcast %c32_i32_12 : i32 to vector<32x32xi32>
    %39 = arith.cmpi slt, %37, %38 : vector<32x32xi32>
    %c31_i32_13 = arith.constant 31 : i32
    %40 = tpu.dynamic_rotate %34 by %c31_i32_13 dim 0 : vector<32x32xf32>, i32 -> vector<32x32xf32>
    %cst_14 = arith.constant 0xFF800000 : f32
    %41 = vector.broadcast %cst_14 : f32 to vector<32x32xf32>
    %42 = arith.select %39, %40, %41 : vector<32x32xi1>, vector<32x32xf32>
    %c1_i32_15 = arith.constant 1 : i32
    %43 = vector.broadcast %c1_i32_15 : i32 to vector<32x32xi32>
    %44 = arith.subi %35, %43 : vector<32x32xi32>
    %c0_i32_16 = arith.constant 0 : i32
    %45 = vector.broadcast %c0_i32_16 : i32 to vector<32x32xi32>
    %46 = arith.cmpi sge, %44, %45 : vector<32x32xi32>
    %c1_i32_17 = arith.constant 1 : i32
    %47 = tpu.dynamic_rotate %34 by %c1_i32_17 dim 0 : vector<32x32xf32>, i32 -> vector<32x32xf32>
    %cst_18 = arith.constant 0xFF800000 : f32
    %48 = vector.broadcast %cst_18 : f32 to vector<32x32xf32>
    %49 = arith.select %46, %47, %48 : vector<32x32xi1>, vector<32x32xf32>
    %50 = arith.maximumf %42, %49 : vector<32x32xf32>
    %51 = arith.maximumf %34, %50 : vector<32x32xf32>
    %c2_i32_19 = arith.constant 2 : i32
    %52 = vector.broadcast %c2_i32_19 : i32 to vector<32x32xi32>
    %53 = arith.addi %35, %52 : vector<32x32xi32>
    %c32_i32_20 = arith.constant 32 : i32
    %54 = vector.broadcast %c32_i32_20 : i32 to vector<32x32xi32>
    %55 = arith.cmpi slt, %53, %54 : vector<32x32xi32>
    %c30_i32_21 = arith.constant 30 : i32
    %56 = tpu.dynamic_rotate %34 by %c30_i32_21 dim 0 : vector<32x32xf32>, i32 -> vector<32x32xf32>
    %cst_22 = arith.constant 0xFF800000 : f32
    %57 = vector.broadcast %cst_22 : f32 to vector<32x32xf32>
    %58 = arith.select %55, %56, %57 : vector<32x32xi1>, vector<32x32xf32>
    %c2_i32_23 = arith.constant 2 : i32
    %59 = vector.broadcast %c2_i32_23 : i32 to vector<32x32xi32>
    %60 = arith.subi %35, %59 : vector<32x32xi32>
    %c0_i32_24 = arith.constant 0 : i32
    %61 = vector.broadcast %c0_i32_24 : i32 to vector<32x32xi32>
    %62 = arith.cmpi sge, %60, %61 : vector<32x32xi32>
    %c2_i32_25 = arith.constant 2 : i32
    %63 = tpu.dynamic_rotate %34 by %c2_i32_25 dim 0 : vector<32x32xf32>, i32 -> vector<32x32xf32>
    %cst_26 = arith.constant 0xFF800000 : f32
    %64 = vector.broadcast %cst_26 : f32 to vector<32x32xf32>
    %65 = arith.select %62, %63, %64 : vector<32x32xi1>, vector<32x32xf32>
    %66 = arith.maximumf %58, %65 : vector<32x32xf32>
    %67 = arith.maximumf %51, %66 : vector<32x32xf32>
    %68 = arith.cmpf oeq, %1, %67 : vector<32x32xf32>
    %69 = arith.extui %68 : vector<32x32xi1> to vector<32x32xi32>
    %70 = arith.sitofp %69 : vector<32x32xi32> to vector<32x32xf32>
    %71 = tpu.iota {dimensions = array<i32: 1>} : vector<32x32xi32>
    %c1_i32_27 = arith.constant 1 : i32
    %72 = vector.broadcast %c1_i32_27 : i32 to vector<32x32xi32>
    %73 = arith.addi %71, %72 : vector<32x32xi32>
    %c32_i32_28 = arith.constant 32 : i32
    %74 = vector.broadcast %c32_i32_28 : i32 to vector<32x32xi32>
    %75 = arith.cmpi slt, %73, %74 : vector<32x32xi32>
    %c31_i32_29 = arith.constant 31 : i32
    %76 = tpu.dynamic_rotate %70 by %c31_i32_29 dim 1 : vector<32x32xf32>, i32 -> vector<32x32xf32>
    %cst_30 = arith.constant 0xFF800000 : f32
    %77 = vector.broadcast %cst_30 : f32 to vector<32x32xf32>
    %78 = arith.select %75, %76, %77 : vector<32x32xi1>, vector<32x32xf32>
    %c1_i32_31 = arith.constant 1 : i32
    %79 = vector.broadcast %c1_i32_31 : i32 to vector<32x32xi32>
    %80 = arith.subi %71, %79 : vector<32x32xi32>
    %c0_i32_32 = arith.constant 0 : i32
    %81 = vector.broadcast %c0_i32_32 : i32 to vector<32x32xi32>
    %82 = arith.cmpi sge, %80, %81 : vector<32x32xi32>
    %c1_i32_33 = arith.constant 1 : i32
    %83 = tpu.dynamic_rotate %70 by %c1_i32_33 dim 1 : vector<32x32xf32>, i32 -> vector<32x32xf32>
    %cst_34 = arith.constant 0xFF800000 : f32
    %84 = vector.broadcast %cst_34 : f32 to vector<32x32xf32>
    %85 = arith.select %82, %83, %84 : vector<32x32xi1>, vector<32x32xf32>
    %86 = arith.maximumf %78, %85 : vector<32x32xf32>
    %87 = arith.maximumf %70, %86 : vector<32x32xf32>
    %c2_i32_35 = arith.constant 2 : i32
    %88 = vector.broadcast %c2_i32_35 : i32 to vector<32x32xi32>
    %89 = arith.addi %71, %88 : vector<32x32xi32>
    %c32_i32_36 = arith.constant 32 : i32
    %90 = vector.broadcast %c32_i32_36 : i32 to vector<32x32xi32>
    %91 = arith.cmpi slt, %89, %90 : vector<32x32xi32>
    %c30_i32_37 = arith.constant 30 : i32
    %92 = tpu.dynamic_rotate %70 by %c30_i32_37 dim 1 : vector<32x32xf32>, i32 -> vector<32x32xf32>
    %cst_38 = arith.constant 0xFF800000 : f32
    %93 = vector.broadcast %cst_38 : f32 to vector<32x32xf32>
    %94 = arith.select %91, %92, %93 : vector<32x32xi1>, vector<32x32xf32>
    %c2_i32_39 = arith.constant 2 : i32
    %95 = vector.broadcast %c2_i32_39 : i32 to vector<32x32xi32>
    %96 = arith.subi %71, %95 : vector<32x32xi32>
    %c0_i32_40 = arith.constant 0 : i32
    %97 = vector.broadcast %c0_i32_40 : i32 to vector<32x32xi32>
    %98 = arith.cmpi sge, %96, %97 : vector<32x32xi32>
    %c2_i32_41 = arith.constant 2 : i32
    %99 = tpu.dynamic_rotate %70 by %c2_i32_41 dim 1 : vector<32x32xf32>, i32 -> vector<32x32xf32>
    %cst_42 = arith.constant 0xFF800000 : f32
    %100 = vector.broadcast %cst_42 : f32 to vector<32x32xf32>
    %101 = arith.select %98, %99, %100 : vector<32x32xi1>, vector<32x32xf32>
    %102 = arith.maximumf %94, %101 : vector<32x32xf32>
    %103 = arith.maximumf %87, %102 : vector<32x32xf32>
    %104 = tpu.iota {dimensions = array<i32: 0>} : vector<32x32xi32>
    %c1_i32_43 = arith.constant 1 : i32
    %105 = vector.broadcast %c1_i32_43 : i32 to vector<32x32xi32>
    %106 = arith.addi %104, %105 : vector<32x32xi32>
    %c32_i32_44 = arith.constant 32 : i32
    %107 = vector.broadcast %c32_i32_44 : i32 to vector<32x32xi32>
    %108 = arith.cmpi slt, %106, %107 : vector<32x32xi32>
    %c31_i32_45 = arith.constant 31 : i32
    %109 = tpu.dynamic_rotate %103 by %c31_i32_45 dim 0 : vector<32x32xf32>, i32 -> vector<32x32xf32>
    %cst_46 = arith.constant 0xFF800000 : f32
    %110 = vector.broadcast %cst_46 : f32 to vector<32x32xf32>
    %111 = arith.select %108, %109, %110 : vector<32x32xi1>, vector<32x32xf32>
    %c1_i32_47 = arith.constant 1 : i32
    %112 = vector.broadcast %c1_i32_47 : i32 to vector<32x32xi32>
    %113 = arith.subi %104, %112 : vector<32x32xi32>
    %c0_i32_48 = arith.constant 0 : i32
    %114 = vector.broadcast %c0_i32_48 : i32 to vector<32x32xi32>
    %115 = arith.cmpi sge, %113, %114 : vector<32x32xi32>
    %c1_i32_49 = arith.constant 1 : i32
    %116 = tpu.dynamic_rotate %103 by %c1_i32_49 dim 0 : vector<32x32xf32>, i32 -> vector<32x32xf32>
    %cst_50 = arith.constant 0xFF800000 : f32
    %117 = vector.broadcast %cst_50 : f32 to vector<32x32xf32>
    %118 = arith.select %115, %116, %117 : vector<32x32xi1>, vector<32x32xf32>
    %119 = arith.maximumf %111, %118 : vector<32x32xf32>
    %120 = arith.maximumf %103, %119 : vector<32x32xf32>
    %c2_i32_51 = arith.constant 2 : i32
    %121 = vector.broadcast %c2_i32_51 : i32 to vector<32x32xi32>
    %122 = arith.addi %104, %121 : vector<32x32xi32>
    %c32_i32_52 = arith.constant 32 : i32
    %123 = vector.broadcast %c32_i32_52 : i32 to vector<32x32xi32>
    %124 = arith.cmpi slt, %122, %123 : vector<32x32xi32>
    %c30_i32_53 = arith.constant 30 : i32
    %125 = tpu.dynamic_rotate %103 by %c30_i32_53 dim 0 : vector<32x32xf32>, i32 -> vector<32x32xf32>
    %cst_54 = arith.constant 0xFF800000 : f32
    %126 = vector.broadcast %cst_54 : f32 to vector<32x32xf32>
    %127 = arith.select %124, %125, %126 : vector<32x32xi1>, vector<32x32xf32>
    %c2_i32_55 = arith.constant 2 : i32
    %128 = vector.broadcast %c2_i32_55 : i32 to vector<32x32xi32>
    %129 = arith.subi %104, %128 : vector<32x32xi32>
    %c0_i32_56 = arith.constant 0 : i32
    %130 = vector.broadcast %c0_i32_56 : i32 to vector<32x32xi32>
    %131 = arith.cmpi sge, %129, %130 : vector<32x32xi32>
    %c2_i32_57 = arith.constant 2 : i32
    %132 = tpu.dynamic_rotate %103 by %c2_i32_57 dim 0 : vector<32x32xf32>, i32 -> vector<32x32xf32>
    %cst_58 = arith.constant 0xFF800000 : f32
    %133 = vector.broadcast %cst_58 : f32 to vector<32x32xf32>
    %134 = arith.select %131, %132, %133 : vector<32x32xi1>, vector<32x32xf32>
    %135 = arith.maximumf %127, %134 : vector<32x32xf32>
    %136 = arith.maximumf %120, %135 : vector<32x32xf32>
    %cst_59 = arith.constant 0.000000e+00 : f32
    %137 = vector.broadcast %cst_59 : f32 to vector<32x32xf32>
    %138 = arith.cmpf ogt, %136, %137 : vector<32x32xf32>
    %cst_60 = arith.constant 0.000000e+00 : f32
    %139 = vector.broadcast %cst_60 : f32 to vector<32x32xf32>
    %140 = arith.select %138, %139, %1 : vector<32x32xi1>, vector<32x32xf32>
    %141 = tpu.iota {dimensions = array<i32: 1>} : vector<32x32xi32>
    %c1_i32_61 = arith.constant 1 : i32
    %142 = vector.broadcast %c1_i32_61 : i32 to vector<32x32xi32>
    %143 = arith.addi %141, %142 : vector<32x32xi32>
    %c32_i32_62 = arith.constant 32 : i32
    %144 = vector.broadcast %c32_i32_62 : i32 to vector<32x32xi32>
    %145 = arith.cmpi slt, %143, %144 : vector<32x32xi32>
    %c31_i32_63 = arith.constant 31 : i32
    %146 = tpu.dynamic_rotate %140 by %c31_i32_63 dim 1 : vector<32x32xf32>, i32 -> vector<32x32xf32>
    %cst_64 = arith.constant 0xFF800000 : f32
    %147 = vector.broadcast %cst_64 : f32 to vector<32x32xf32>
    %148 = arith.select %145, %146, %147 : vector<32x32xi1>, vector<32x32xf32>
    %c1_i32_65 = arith.constant 1 : i32
    %149 = vector.broadcast %c1_i32_65 : i32 to vector<32x32xi32>
    %150 = arith.subi %141, %149 : vector<32x32xi32>
    %c0_i32_66 = arith.constant 0 : i32
    %151 = vector.broadcast %c0_i32_66 : i32 to vector<32x32xi32>
    %152 = arith.cmpi sge, %150, %151 : vector<32x32xi32>
    %c1_i32_67 = arith.constant 1 : i32
    %153 = tpu.dynamic_rotate %140 by %c1_i32_67 dim 1 : vector<32x32xf32>, i32 -> vector<32x32xf32>
    %cst_68 = arith.constant 0xFF800000 : f32
    %154 = vector.broadcast %cst_68 : f32 to vector<32x32xf32>
    %155 = arith.select %152, %153, %154 : vector<32x32xi1>, vector<32x32xf32>
    %156 = arith.maximumf %148, %155 : vector<32x32xf32>
    %157 = arith.maximumf %140, %156 : vector<32x32xf32>
    %c2_i32_69 = arith.constant 2 : i32
    %158 = vector.broadcast %c2_i32_69 : i32 to vector<32x32xi32>
    %159 = arith.addi %141, %158 : vector<32x32xi32>
    %c32_i32_70 = arith.constant 32 : i32
    %160 = vector.broadcast %c32_i32_70 : i32 to vector<32x32xi32>
    %161 = arith.cmpi slt, %159, %160 : vector<32x32xi32>
    %c30_i32_71 = arith.constant 30 : i32
    %162 = tpu.dynamic_rotate %140 by %c30_i32_71 dim 1 : vector<32x32xf32>, i32 -> vector<32x32xf32>
    %cst_72 = arith.constant 0xFF800000 : f32
    %163 = vector.broadcast %cst_72 : f32 to vector<32x32xf32>
    %164 = arith.select %161, %162, %163 : vector<32x32xi1>, vector<32x32xf32>
    %c2_i32_73 = arith.constant 2 : i32
    %165 = vector.broadcast %c2_i32_73 : i32 to vector<32x32xi32>
    %166 = arith.subi %141, %165 : vector<32x32xi32>
    %c0_i32_74 = arith.constant 0 : i32
    %167 = vector.broadcast %c0_i32_74 : i32 to vector<32x32xi32>
    %168 = arith.cmpi sge, %166, %167 : vector<32x32xi32>
    %c2_i32_75 = arith.constant 2 : i32
    %169 = tpu.dynamic_rotate %140 by %c2_i32_75 dim 1 : vector<32x32xf32>, i32 -> vector<32x32xf32>
    %cst_76 = arith.constant 0xFF800000 : f32
    %170 = vector.broadcast %cst_76 : f32 to vector<32x32xf32>
    %171 = arith.select %168, %169, %170 : vector<32x32xi1>, vector<32x32xf32>
    %172 = arith.maximumf %164, %171 : vector<32x32xf32>
    %173 = arith.maximumf %157, %172 : vector<32x32xf32>
    %174 = tpu.iota {dimensions = array<i32: 0>} : vector<32x32xi32>
    %c1_i32_77 = arith.constant 1 : i32
    %175 = vector.broadcast %c1_i32_77 : i32 to vector<32x32xi32>
    %176 = arith.addi %174, %175 : vector<32x32xi32>
    %c32_i32_78 = arith.constant 32 : i32
    %177 = vector.broadcast %c32_i32_78 : i32 to vector<32x32xi32>
    %178 = arith.cmpi slt, %176, %177 : vector<32x32xi32>
    %c31_i32_79 = arith.constant 31 : i32
    %179 = tpu.dynamic_rotate %173 by %c31_i32_79 dim 0 : vector<32x32xf32>, i32 -> vector<32x32xf32>
    %cst_80 = arith.constant 0xFF800000 : f32
    %180 = vector.broadcast %cst_80 : f32 to vector<32x32xf32>
    %181 = arith.select %178, %179, %180 : vector<32x32xi1>, vector<32x32xf32>
    %c1_i32_81 = arith.constant 1 : i32
    %182 = vector.broadcast %c1_i32_81 : i32 to vector<32x32xi32>
    %183 = arith.subi %174, %182 : vector<32x32xi32>
    %c0_i32_82 = arith.constant 0 : i32
    %184 = vector.broadcast %c0_i32_82 : i32 to vector<32x32xi32>
    %185 = arith.cmpi sge, %183, %184 : vector<32x32xi32>
    %c1_i32_83 = arith.constant 1 : i32
    %186 = tpu.dynamic_rotate %173 by %c1_i32_83 dim 0 : vector<32x32xf32>, i32 -> vector<32x32xf32>
    %cst_84 = arith.constant 0xFF800000 : f32
    %187 = vector.broadcast %cst_84 : f32 to vector<32x32xf32>
    %188 = arith.select %185, %186, %187 : vector<32x32xi1>, vector<32x32xf32>
    %189 = arith.maximumf %181, %188 : vector<32x32xf32>
    %190 = arith.maximumf %173, %189 : vector<32x32xf32>
    %c2_i32_85 = arith.constant 2 : i32
    %191 = vector.broadcast %c2_i32_85 : i32 to vector<32x32xi32>
    %192 = arith.addi %174, %191 : vector<32x32xi32>
    %c32_i32_86 = arith.constant 32 : i32
    %193 = vector.broadcast %c32_i32_86 : i32 to vector<32x32xi32>
    %194 = arith.cmpi slt, %192, %193 : vector<32x32xi32>
    %c30_i32_87 = arith.constant 30 : i32
    %195 = tpu.dynamic_rotate %173 by %c30_i32_87 dim 0 : vector<32x32xf32>, i32 -> vector<32x32xf32>
    %cst_88 = arith.constant 0xFF800000 : f32
    %196 = vector.broadcast %cst_88 : f32 to vector<32x32xf32>
    %197 = arith.select %194, %195, %196 : vector<32x32xi1>, vector<32x32xf32>
    %c2_i32_89 = arith.constant 2 : i32
    %198 = vector.broadcast %c2_i32_89 : i32 to vector<32x32xi32>
    %199 = arith.subi %174, %198 : vector<32x32xi32>
    %c0_i32_90 = arith.constant 0 : i32
    %200 = vector.broadcast %c0_i32_90 : i32 to vector<32x32xi32>
    %201 = arith.cmpi sge, %199, %200 : vector<32x32xi32>
    %c2_i32_91 = arith.constant 2 : i32
    %202 = tpu.dynamic_rotate %173 by %c2_i32_91 dim 0 : vector<32x32xf32>, i32 -> vector<32x32xf32>
    %cst_92 = arith.constant 0xFF800000 : f32
    %203 = vector.broadcast %cst_92 : f32 to vector<32x32xf32>
    %204 = arith.select %201, %202, %203 : vector<32x32xi1>, vector<32x32xf32>
    %205 = arith.maximumf %197, %204 : vector<32x32xf32>
    %206 = arith.maximumf %190, %205 : vector<32x32xf32>
    %207 = arith.cmpf oeq, %140, %206 : vector<32x32xf32>
    %cst_93 = arith.constant dense<true> : vector<32x32xi1>
    %208 = arith.xori %138, %cst_93 : vector<32x32xi1>
    %209 = arith.andi %207, %208 : vector<32x32xi1>
    %210 = arith.ori %68, %209 : vector<32x32xi1>
    %211 = arith.extui %210 : vector<32x32xi1> to vector<32x32xi32>
    %212 = arith.sitofp %211 : vector<32x32xi32> to vector<32x32xf32>
    %213 = tpu.iota {dimensions = array<i32: 1>} : vector<32x32xi32>
    %c1_i32_94 = arith.constant 1 : i32
    %214 = vector.broadcast %c1_i32_94 : i32 to vector<32x32xi32>
    %215 = arith.addi %213, %214 : vector<32x32xi32>
    %c32_i32_95 = arith.constant 32 : i32
    %216 = vector.broadcast %c32_i32_95 : i32 to vector<32x32xi32>
    %217 = arith.cmpi slt, %215, %216 : vector<32x32xi32>
    %c31_i32_96 = arith.constant 31 : i32
    %218 = tpu.dynamic_rotate %212 by %c31_i32_96 dim 1 : vector<32x32xf32>, i32 -> vector<32x32xf32>
    %cst_97 = arith.constant 0xFF800000 : f32
    %219 = vector.broadcast %cst_97 : f32 to vector<32x32xf32>
    %220 = arith.select %217, %218, %219 : vector<32x32xi1>, vector<32x32xf32>
    %c1_i32_98 = arith.constant 1 : i32
    %221 = vector.broadcast %c1_i32_98 : i32 to vector<32x32xi32>
    %222 = arith.subi %213, %221 : vector<32x32xi32>
    %c0_i32_99 = arith.constant 0 : i32
    %223 = vector.broadcast %c0_i32_99 : i32 to vector<32x32xi32>
    %224 = arith.cmpi sge, %222, %223 : vector<32x32xi32>
    %c1_i32_100 = arith.constant 1 : i32
    %225 = tpu.dynamic_rotate %212 by %c1_i32_100 dim 1 : vector<32x32xf32>, i32 -> vector<32x32xf32>
    %cst_101 = arith.constant 0xFF800000 : f32
    %226 = vector.broadcast %cst_101 : f32 to vector<32x32xf32>
    %227 = arith.select %224, %225, %226 : vector<32x32xi1>, vector<32x32xf32>
    %228 = arith.maximumf %220, %227 : vector<32x32xf32>
    %229 = arith.maximumf %212, %228 : vector<32x32xf32>
    %c2_i32_102 = arith.constant 2 : i32
    %230 = vector.broadcast %c2_i32_102 : i32 to vector<32x32xi32>
    %231 = arith.addi %213, %230 : vector<32x32xi32>
    %c32_i32_103 = arith.constant 32 : i32
    %232 = vector.broadcast %c32_i32_103 : i32 to vector<32x32xi32>
    %233 = arith.cmpi slt, %231, %232 : vector<32x32xi32>
    %c30_i32_104 = arith.constant 30 : i32
    %234 = tpu.dynamic_rotate %212 by %c30_i32_104 dim 1 : vector<32x32xf32>, i32 -> vector<32x32xf32>
    %cst_105 = arith.constant 0xFF800000 : f32
    %235 = vector.broadcast %cst_105 : f32 to vector<32x32xf32>
    %236 = arith.select %233, %234, %235 : vector<32x32xi1>, vector<32x32xf32>
    %c2_i32_106 = arith.constant 2 : i32
    %237 = vector.broadcast %c2_i32_106 : i32 to vector<32x32xi32>
    %238 = arith.subi %213, %237 : vector<32x32xi32>
    %c0_i32_107 = arith.constant 0 : i32
    %239 = vector.broadcast %c0_i32_107 : i32 to vector<32x32xi32>
    %240 = arith.cmpi sge, %238, %239 : vector<32x32xi32>
    %c2_i32_108 = arith.constant 2 : i32
    %241 = tpu.dynamic_rotate %212 by %c2_i32_108 dim 1 : vector<32x32xf32>, i32 -> vector<32x32xf32>
    %cst_109 = arith.constant 0xFF800000 : f32
    %242 = vector.broadcast %cst_109 : f32 to vector<32x32xf32>
    %243 = arith.select %240, %241, %242 : vector<32x32xi1>, vector<32x32xf32>
    %244 = arith.maximumf %236, %243 : vector<32x32xf32>
    %245 = arith.maximumf %229, %244 : vector<32x32xf32>
    %246 = tpu.iota {dimensions = array<i32: 0>} : vector<32x32xi32>
    %c1_i32_110 = arith.constant 1 : i32
    %247 = vector.broadcast %c1_i32_110 : i32 to vector<32x32xi32>
    %248 = arith.addi %246, %247 : vector<32x32xi32>
    %c32_i32_111 = arith.constant 32 : i32
    %249 = vector.broadcast %c32_i32_111 : i32 to vector<32x32xi32>
    %250 = arith.cmpi slt, %248, %249 : vector<32x32xi32>
    %c31_i32_112 = arith.constant 31 : i32
    %251 = tpu.dynamic_rotate %245 by %c31_i32_112 dim 0 : vector<32x32xf32>, i32 -> vector<32x32xf32>
    %cst_113 = arith.constant 0xFF800000 : f32
    %252 = vector.broadcast %cst_113 : f32 to vector<32x32xf32>
    %253 = arith.select %250, %251, %252 : vector<32x32xi1>, vector<32x32xf32>
    %c1_i32_114 = arith.constant 1 : i32
    %254 = vector.broadcast %c1_i32_114 : i32 to vector<32x32xi32>
    %255 = arith.subi %246, %254 : vector<32x32xi32>
    %c0_i32_115 = arith.constant 0 : i32
    %256 = vector.broadcast %c0_i32_115 : i32 to vector<32x32xi32>
    %257 = arith.cmpi sge, %255, %256 : vector<32x32xi32>
    %c1_i32_116 = arith.constant 1 : i32
    %258 = tpu.dynamic_rotate %245 by %c1_i32_116 dim 0 : vector<32x32xf32>, i32 -> vector<32x32xf32>
    %cst_117 = arith.constant 0xFF800000 : f32
    %259 = vector.broadcast %cst_117 : f32 to vector<32x32xf32>
    %260 = arith.select %257, %258, %259 : vector<32x32xi1>, vector<32x32xf32>
    %261 = arith.maximumf %253, %260 : vector<32x32xf32>
    %262 = arith.maximumf %245, %261 : vector<32x32xf32>
    %c2_i32_118 = arith.constant 2 : i32
    %263 = vector.broadcast %c2_i32_118 : i32 to vector<32x32xi32>
    %264 = arith.addi %246, %263 : vector<32x32xi32>
    %c32_i32_119 = arith.constant 32 : i32
    %265 = vector.broadcast %c32_i32_119 : i32 to vector<32x32xi32>
    %266 = arith.cmpi slt, %264, %265 : vector<32x32xi32>
    %c30_i32_120 = arith.constant 30 : i32
    %267 = tpu.dynamic_rotate %245 by %c30_i32_120 dim 0 : vector<32x32xf32>, i32 -> vector<32x32xf32>
    %cst_121 = arith.constant 0xFF800000 : f32
    %268 = vector.broadcast %cst_121 : f32 to vector<32x32xf32>
    %269 = arith.select %266, %267, %268 : vector<32x32xi1>, vector<32x32xf32>
    %c2_i32_122 = arith.constant 2 : i32
    %270 = vector.broadcast %c2_i32_122 : i32 to vector<32x32xi32>
    %271 = arith.subi %246, %270 : vector<32x32xi32>
    %c0_i32_123 = arith.constant 0 : i32
    %272 = vector.broadcast %c0_i32_123 : i32 to vector<32x32xi32>
    %273 = arith.cmpi sge, %271, %272 : vector<32x32xi32>
    %c2_i32_124 = arith.constant 2 : i32
    %274 = tpu.dynamic_rotate %245 by %c2_i32_124 dim 0 : vector<32x32xf32>, i32 -> vector<32x32xf32>
    %cst_125 = arith.constant 0xFF800000 : f32
    %275 = vector.broadcast %cst_125 : f32 to vector<32x32xf32>
    %276 = arith.select %273, %274, %275 : vector<32x32xi1>, vector<32x32xf32>
    %277 = arith.maximumf %269, %276 : vector<32x32xf32>
    %278 = arith.maximumf %262, %277 : vector<32x32xf32>
    %cst_126 = arith.constant 0.000000e+00 : f32
    %279 = vector.broadcast %cst_126 : f32 to vector<32x32xf32>
    %280 = arith.cmpf ogt, %278, %279 : vector<32x32xf32>
    %cst_127 = arith.constant 0.000000e+00 : f32
    %281 = vector.broadcast %cst_127 : f32 to vector<32x32xf32>
    %282 = arith.select %280, %281, %1 : vector<32x32xi1>, vector<32x32xf32>
    %283 = tpu.iota {dimensions = array<i32: 1>} : vector<32x32xi32>
    %c1_i32_128 = arith.constant 1 : i32
    %284 = vector.broadcast %c1_i32_128 : i32 to vector<32x32xi32>
    %285 = arith.addi %283, %284 : vector<32x32xi32>
    %c32_i32_129 = arith.constant 32 : i32
    %286 = vector.broadcast %c32_i32_129 : i32 to vector<32x32xi32>
    %287 = arith.cmpi slt, %285, %286 : vector<32x32xi32>
    %c31_i32_130 = arith.constant 31 : i32
    %288 = tpu.dynamic_rotate %282 by %c31_i32_130 dim 1 : vector<32x32xf32>, i32 -> vector<32x32xf32>
    %cst_131 = arith.constant 0xFF800000 : f32
    %289 = vector.broadcast %cst_131 : f32 to vector<32x32xf32>
    %290 = arith.select %287, %288, %289 : vector<32x32xi1>, vector<32x32xf32>
    %c1_i32_132 = arith.constant 1 : i32
    %291 = vector.broadcast %c1_i32_132 : i32 to vector<32x32xi32>
    %292 = arith.subi %283, %291 : vector<32x32xi32>
    %c0_i32_133 = arith.constant 0 : i32
    %293 = vector.broadcast %c0_i32_133 : i32 to vector<32x32xi32>
    %294 = arith.cmpi sge, %292, %293 : vector<32x32xi32>
    %c1_i32_134 = arith.constant 1 : i32
    %295 = tpu.dynamic_rotate %282 by %c1_i32_134 dim 1 : vector<32x32xf32>, i32 -> vector<32x32xf32>
    %cst_135 = arith.constant 0xFF800000 : f32
    %296 = vector.broadcast %cst_135 : f32 to vector<32x32xf32>
    %297 = arith.select %294, %295, %296 : vector<32x32xi1>, vector<32x32xf32>
    %298 = arith.maximumf %290, %297 : vector<32x32xf32>
    %299 = arith.maximumf %282, %298 : vector<32x32xf32>
    %c2_i32_136 = arith.constant 2 : i32
    %300 = vector.broadcast %c2_i32_136 : i32 to vector<32x32xi32>
    %301 = arith.addi %283, %300 : vector<32x32xi32>
    %c32_i32_137 = arith.constant 32 : i32
    %302 = vector.broadcast %c32_i32_137 : i32 to vector<32x32xi32>
    %303 = arith.cmpi slt, %301, %302 : vector<32x32xi32>
    %c30_i32_138 = arith.constant 30 : i32
    %304 = tpu.dynamic_rotate %282 by %c30_i32_138 dim 1 : vector<32x32xf32>, i32 -> vector<32x32xf32>
    %cst_139 = arith.constant 0xFF800000 : f32
    %305 = vector.broadcast %cst_139 : f32 to vector<32x32xf32>
    %306 = arith.select %303, %304, %305 : vector<32x32xi1>, vector<32x32xf32>
    %c2_i32_140 = arith.constant 2 : i32
    %307 = vector.broadcast %c2_i32_140 : i32 to vector<32x32xi32>
    %308 = arith.subi %283, %307 : vector<32x32xi32>
    %c0_i32_141 = arith.constant 0 : i32
    %309 = vector.broadcast %c0_i32_141 : i32 to vector<32x32xi32>
    %310 = arith.cmpi sge, %308, %309 : vector<32x32xi32>
    %c2_i32_142 = arith.constant 2 : i32
    %311 = tpu.dynamic_rotate %282 by %c2_i32_142 dim 1 : vector<32x32xf32>, i32 -> vector<32x32xf32>
    %cst_143 = arith.constant 0xFF800000 : f32
    %312 = vector.broadcast %cst_143 : f32 to vector<32x32xf32>
    %313 = arith.select %310, %311, %312 : vector<32x32xi1>, vector<32x32xf32>
    %314 = arith.maximumf %306, %313 : vector<32x32xf32>
    %315 = arith.maximumf %299, %314 : vector<32x32xf32>
    %316 = tpu.iota {dimensions = array<i32: 0>} : vector<32x32xi32>
    %c1_i32_144 = arith.constant 1 : i32
    %317 = vector.broadcast %c1_i32_144 : i32 to vector<32x32xi32>
    %318 = arith.addi %316, %317 : vector<32x32xi32>
    %c32_i32_145 = arith.constant 32 : i32
    %319 = vector.broadcast %c32_i32_145 : i32 to vector<32x32xi32>
    %320 = arith.cmpi slt, %318, %319 : vector<32x32xi32>
    %c31_i32_146 = arith.constant 31 : i32
    %321 = tpu.dynamic_rotate %315 by %c31_i32_146 dim 0 : vector<32x32xf32>, i32 -> vector<32x32xf32>
    %cst_147 = arith.constant 0xFF800000 : f32
    %322 = vector.broadcast %cst_147 : f32 to vector<32x32xf32>
    %323 = arith.select %320, %321, %322 : vector<32x32xi1>, vector<32x32xf32>
    %c1_i32_148 = arith.constant 1 : i32
    %324 = vector.broadcast %c1_i32_148 : i32 to vector<32x32xi32>
    %325 = arith.subi %316, %324 : vector<32x32xi32>
    %c0_i32_149 = arith.constant 0 : i32
    %326 = vector.broadcast %c0_i32_149 : i32 to vector<32x32xi32>
    %327 = arith.cmpi sge, %325, %326 : vector<32x32xi32>
    %c1_i32_150 = arith.constant 1 : i32
    %328 = tpu.dynamic_rotate %315 by %c1_i32_150 dim 0 : vector<32x32xf32>, i32 -> vector<32x32xf32>
    %cst_151 = arith.constant 0xFF800000 : f32
    %329 = vector.broadcast %cst_151 : f32 to vector<32x32xf32>
    %330 = arith.select %327, %328, %329 : vector<32x32xi1>, vector<32x32xf32>
    %331 = arith.maximumf %323, %330 : vector<32x32xf32>
    %332 = arith.maximumf %315, %331 : vector<32x32xf32>
    %c2_i32_152 = arith.constant 2 : i32
    %333 = vector.broadcast %c2_i32_152 : i32 to vector<32x32xi32>
    %334 = arith.addi %316, %333 : vector<32x32xi32>
    %c32_i32_153 = arith.constant 32 : i32
    %335 = vector.broadcast %c32_i32_153 : i32 to vector<32x32xi32>
    %336 = arith.cmpi slt, %334, %335 : vector<32x32xi32>
    %c30_i32_154 = arith.constant 30 : i32
    %337 = tpu.dynamic_rotate %315 by %c30_i32_154 dim 0 : vector<32x32xf32>, i32 -> vector<32x32xf32>
    %cst_155 = arith.constant 0xFF800000 : f32
    %338 = vector.broadcast %cst_155 : f32 to vector<32x32xf32>
    %339 = arith.select %336, %337, %338 : vector<32x32xi1>, vector<32x32xf32>
    %c2_i32_156 = arith.constant 2 : i32
    %340 = vector.broadcast %c2_i32_156 : i32 to vector<32x32xi32>
    %341 = arith.subi %316, %340 : vector<32x32xi32>
    %c0_i32_157 = arith.constant 0 : i32
    %342 = vector.broadcast %c0_i32_157 : i32 to vector<32x32xi32>
    %343 = arith.cmpi sge, %341, %342 : vector<32x32xi32>
    %c2_i32_158 = arith.constant 2 : i32
    %344 = tpu.dynamic_rotate %315 by %c2_i32_158 dim 0 : vector<32x32xf32>, i32 -> vector<32x32xf32>
    %cst_159 = arith.constant 0xFF800000 : f32
    %345 = vector.broadcast %cst_159 : f32 to vector<32x32xf32>
    %346 = arith.select %343, %344, %345 : vector<32x32xi1>, vector<32x32xf32>
    %347 = arith.maximumf %339, %346 : vector<32x32xf32>
    %348 = arith.maximumf %332, %347 : vector<32x32xf32>
    %349 = arith.cmpf oeq, %282, %348 : vector<32x32xf32>
    %cst_160 = arith.constant dense<true> : vector<32x32xi1>
    %350 = arith.xori %280, %cst_160 : vector<32x32xi1>
    %351 = arith.andi %349, %350 : vector<32x32xi1>
    %352 = arith.ori %210, %351 : vector<32x32xi1>
    %cst_161 = arith.constant 0.000000e+00 : f32
    %353 = vector.broadcast %cst_161 : f32 to vector<32x32xf32>
    %354 = arith.select %352, %1, %353 : vector<32x32xi1>, vector<32x32xf32>
    %355 = tpu.iota {dimensions = array<i32: 0>} : vector<32x32xi32>
    %356 = tpu.iota {dimensions = array<i32: 1>} : vector<32x32xi32>
    %c3_i32 = arith.constant 3 : i32
    %357 = vector.broadcast %c3_i32 : i32 to vector<32x32xi32>
    %358 = arith.cmpi sge, %355, %357 : vector<32x32xi32>
    %c30_i32_162 = arith.constant 30 : i32
    %359 = vector.broadcast %c30_i32_162 : i32 to vector<32x32xi32>
    %360 = arith.cmpi slt, %355, %359 : vector<32x32xi32>
    %361 = arith.andi %358, %360 : vector<32x32xi1>
    %c3_i32_163 = arith.constant 3 : i32
    %362 = vector.broadcast %c3_i32_163 : i32 to vector<32x32xi32>
    %363 = arith.cmpi sge, %356, %362 : vector<32x32xi32>
    %364 = arith.andi %361, %363 : vector<32x32xi1>
    %c30_i32_164 = arith.constant 30 : i32
    %365 = vector.broadcast %c30_i32_164 : i32 to vector<32x32xi32>
    %366 = arith.cmpi slt, %356, %365 : vector<32x32xi32>
    %367 = arith.andi %364, %366 : vector<32x32xi1>
    %cst_165 = arith.constant 0.000000e+00 : f32
    %368 = vector.broadcast %cst_165 : f32 to vector<32x32xf32>
    %369 = arith.select %367, %354, %368 : vector<32x32xi1>, vector<32x32xf32>
    %c0_166 = arith.constant 0 : index
    %c0_167 = arith.constant 0 : index
    %c0_168 = arith.constant 0 : index
    %370 = vector.load %arg2[%c0_166, %c0_167, %c0_168] : memref<1x32x32xf32, #tpu.memory_space<vmem>>, vector<1x32x32xf32>
    %371 = vector.shape_cast %370 : vector<1x32x32xf32> to vector<32x32xf32>
    %372 = vector.shape_cast %369 : vector<32x32xf32> to vector<1x32x32xf32>
    tpu.vector_store %arg2[%c0_166, %c0_167, %c0_168], %372 {strides = array<i32>} : memref<1x32x32xf32, #tpu.memory_space<vmem>>, vector<1x32x32xf32>,
    return
  }
  func.func @transform_0(%arg0: i32) -> (i32, i32, i32) {
    %c0_i32 = arith.constant 0 : i32
    %c0_i32_0 = arith.constant 0 : i32
    %c0_i32_1 = arith.constant 0 : i32
    return %arg0, %c0_i32, %c0_i32_0 : i32, i32, i32
  }
  func.func @transform_1(%arg0: i32) -> (i32, i32, i32) {
    %c0_i32 = arith.constant 0 : i32
    %c0_i32_0 = arith.constant 0 : i32
    %c0_i32_1 = arith.constant 0 : i32
    return %arg0, %c0_i32, %c0_i32_0 : i32, i32, i32
  }
}

module attributes {stable_mosaic.version = 11 : i64} {
  func.func @_desc_gather_kernel(%arg0: i32, %arg1: memref<2x128xi32, #tpu.memory_space<smem>>, %arg2: memref<1x1024x128xf32, #tpu.memory_space<vmem>>, %arg3: memref<1x128x128xf32, #tpu.memory_space<vmem>>) attributes {dimension_semantics = [#tpu.dimension_semantics<parallel>], iteration_bounds = array<i64: 2>, scalar_prefetch = 1 : i64, scratch_operands = 0 : i64, tpu.core_type = #tpu.core_type<tc>, window_params = [{transform_indices = @transform_0, window_bounds = array<i64: 1, 1024, 128>}, {transform_indices = @transform_1, window_bounds = array<i64: 1, 128, 128>}]} {
    %c0_i32 = arith.constant 0 : i32
    %c128_i32 = arith.constant 128 : i32
    %0 = arith.addi %c0_i32, %c128_i32 : i32
    %c1_i32 = arith.constant 1 : i32
    scf.for %arg4 = %c0_i32 to %0 step %c1_i32  : i32 {
      %1 = arith.index_cast %arg0 : i32 to index
      %2 = arith.index_cast %arg4 : i32 to index
      %3 = memref.load %arg1[%1, %2] : memref<2x128xi32, #tpu.memory_space<smem>>
      %c0 = arith.constant 0 : index
      %4 = arith.index_cast %3 : i32 to index
      %c0_1 = arith.constant 0 : index
      %5 = vector.load %arg2[%c0, %4, %c0_1] : memref<1x1024x128xf32, #tpu.memory_space<vmem>>, vector<1x1x128xf32>
      %6 = vector.shape_cast %5 : vector<1x1x128xf32> to vector<1x128xf32>
      %7 = arith.mulf %6, %6 : vector<1x128xf32>
      %cst = arith.constant dense<0.000000e+00> : vector<1xf32>
      %8 = vector.multi_reduction <add>, %7, %cst [1] : vector<1x128xf32> to vector<1xf32>
      %9 = vector.shape_cast %8 : vector<1xf32> to vector<1x1xf32>
      %cst_2 = arith.constant 1.000000e-24 : f32
      %10 = vector.broadcast %cst_2 : f32 to vector<1x1xf32>
      %11 = arith.maximumf %9, %10 : vector<1x1xf32>
      %12 = math.rsqrt %11 : vector<1x1xf32>
      %13 = vector.broadcast %12 : vector<1x1xf32> to vector<1x128xf32>
      %14 = arith.mulf %6, %13 : vector<1x128xf32>
      %c0_3 = arith.constant 0 : index
      %15 = arith.index_cast %arg4 : i32 to index
      %c0_4 = arith.constant 0 : index
      %16 = vector.load %arg3[%c0_3, %15, %c0_4] : memref<1x128x128xf32, #tpu.memory_space<vmem>>, vector<1x1x128xf32>
      %17 = vector.shape_cast %16 : vector<1x1x128xf32> to vector<1x128xf32>
      %18 = vector.shape_cast %14 : vector<1x128xf32> to vector<1x1x128xf32>
      tpu.vector_store %arg3[%c0_3, %15, %c0_4], %18 {strides = array<i32>} : memref<1x128x128xf32, #tpu.memory_space<vmem>>, vector<1x1x128xf32>,
    }
    %c128_i32_0 = arith.constant 128 : i32
    return
  }
  func.func @transform_0(%arg0: i32, %arg1: memref<2x128xi32, #tpu.memory_space<smem>>) -> (i32, i32, i32) {
    %c0_i32 = arith.constant 0 : i32
    %c0_i32_0 = arith.constant 0 : i32
    %c0_i32_1 = arith.constant 0 : i32
    return %arg0, %c0_i32, %c0_i32_0 : i32, i32, i32
  }
  func.func @transform_1(%arg0: i32, %arg1: memref<2x128xi32, #tpu.memory_space<smem>>) -> (i32, i32, i32) {
    %c0_i32 = arith.constant 0 : i32
    %c0_i32_0 = arith.constant 0 : i32
    %c0_i32_1 = arith.constant 0 : i32
    return %arg0, %c0_i32, %c0_i32_0 : i32, i32, i32
  }
}

</mosaic_0001>

<llo_original>
// kernel: dkd_forward.3
$region0: #{dkd_forward.3}
  #allocation0 [shape = 'u32[]', space=smem, size = 0x4, offset = 0x4, fixed_abs, tag = 'smem constant byte address 0x4 - core index']
  #allocation1 [shape = 'u32[144,128]{1,0:T(1,128)}', space=vmem, size = 0x12000, scoped, tag = 'internal scratch']
  #allocation2 [shape = 's32[1]{0}', space=sflag, size = 0x4, scoped, tag = 'scoped memory for dkd_forward.3']
  #allocation3 [shape = 'u8[1024]{0}', space=smem, size = 0x400, scoped, tag = 'prefetched SMEM operand 0']
  %s0 = inlined_call_operand.vmem [shape: s32[2,128], index: 0, kind: input, shape index: {}]
  %s1 = inlined_call_operand.vmem [shape: f32[2,1024,128], index: 1, kind: input, shape index: {}]
  %s2 = inlined_call_operand.vmem [shape: f32[2,128,128], index: 2, kind: output, shape index: {}]
  %s3 = sld [smem:[#allocation0]]
  $region44: #{dkd_forward.3} parent=0
    _
  %s5 = ssub.s32 1, %s3
  %s6 = scalar_select 0, %s5, %s3
  %s7 = sshll.u32 %s0, 4
  %s8 = int_to_ptr.vmem [resolvable:$true] %s7
  %10 = dma.vmem_to_smem %s8, 32, [#allocation3], [#allocation2]
  %11 = dma.done [#allocation2], 32
  %12 = sfence
  loop: start=0, step=1, limit=4
  $region2: #{dkd_forward.3} parent=0 // loop_pre_header
    _
  $region3: #{dkd_forward.3} parent=0 // loop_header
    %s14 = sphi 0, %s18
    %p15 = scmp.ge.s32.totalorder %s14, 4
    %s24 = sphi 0, %s26
    %s27 = sphi 0, %s24
    %s28 = sphi 0, %s27
    %s44 = sphi 0, %s28
    %s50 = sphi 0, %s52
    %s53 = sphi 0, %s50
    %s54 = sphi 0, %s53
    %s70 = sphi 0, %s54
  $region4: #{dkd_forward.3} parent=0 // loop_header_branch
    %17 = sbr.rel (%p15) target = $region8
  $region5: #{dkd_forward.3} parent=0 // loop_body
    %s19 = ssub.s32 %s14, 1
    %s20 = ssub.s32 %s14, 2
    %s21 = sadd.s32 %s14, 1
    %s22 = ssub.s32 %s14, %s21
    %p23 = scmp.eq.s32.totalorder %s22, 0
    %s25 = sadd.s32 %s24, 1
    %s26 = scalar_select %p23, %s24, %s25
    %p29 = pneg %p23
    %p30 = scmp.eq.s32.totalorder %s14, 1
    %p31 = por %p29, %p30
    %p32 = scmp.ne.s32.totalorder %s24, %s27
    %p33 = scmp.eq.s32.totalorder %s14, 0
    %p34 = por %p32, %p33
    %p35 = scmp.ne.s32.totalorder %s24, %s27
    %p36 = scmp.eq.s32.totalorder %s19, 1
    %p37 = por %p35, %p36
    %p38 = scmp.ne.s32.totalorder %s27, %s28
    %p39 = scmp.eq.s32.totalorder %s19, 0
    %p40 = por %p38, %p39
    %p41 = scmp.ne.s32.totalorder %s27, %s28
    %p42 = scmp.eq.s32.totalorder %s20, 1
    %p43 = por %p41, %p42
    %p45 = scmp.ne.s32.totalorder %s28, %s44
    %p46 = scmp.eq.s32.totalorder %s20, 0
    %p47 = por %p45, %p46
    %s48 = ssub.s32 %s14, %s21
    %p49 = scmp.eq.s32.totalorder %s48, 0
    %s51 = sadd.s32 %s50, 1
    %s52 = scalar_select %p49, %s50, %s51
    %p55 = pneg %p49
    %p56 = scmp.eq.s32.totalorder %s14, 1
    %p57 = por %p55, %p56
    %p58 = scmp.ne.s32.totalorder %s50, %s53
    %p59 = scmp.eq.s32.totalorder %s14, 0
    %p60 = por %p58, %p59
    %p61 = scmp.ne.s32.totalorder %s50, %s53
    %p62 = scmp.eq.s32.totalorder %s19, 1
    %p63 = por %p61, %p62
    %p64 = scmp.ne.s32.totalorder %s53, %s54
    %p65 = scmp.eq.s32.totalorder %s19, 0
    %p66 = por %p64, %p65
    %p67 = scmp.ne.s32.totalorder %s53, %s54
    %p68 = scmp.eq.s32.totalorder %s20, 1
    %p69 = por %p67, %p68
    %p71 = scmp.ne.s32.totalorder %s54, %s70
    %p72 = scmp.eq.s32.totalorder %s20, 0
    %p73 = por %p71, %p72
    %p74 = scmp.le.s32.totalorder 1, %s14
    %p75 = scmp.lt.s32.totalorder %s14, 3
    %p76 = pnand %p74, %p75
    %p77 = pneg %p76
    // Predicated region
    $region9: #{dkd_forward.3} parent=5 // pred_check
      _
    $region10: #{dkd_forward.3} parent=5 // pred_check_branch
      %79 = sbr.rel (%p76) target = $region12
    $region11: #{dkd_forward.3} parent=5 // pred_region
      %s80 = ssub.s32 %s14, 1
    $region12: #{dkd_forward.3} parent=5 // pred_fallthru
      _
    %p81 = scmp.lt.s32.totalorder %s14, 2
    // Predicated region
    $region13: #{dkd_forward.3} parent=5 // pred_check
      %p82 = pneg %p81
    $region14: #{dkd_forward.3} parent=5 // pred_check_branch
      %84 = sbr.rel (%p82) target = $region16
    $region15: #{dkd_forward.3} parent=5 // pred_region
      // Predicated region
      $region17: #{dkd_forward.3} parent=15 // pred_check
        %p85 = pneg %p34
      $region18: #{dkd_forward.3} parent=15 // pred_check_branch
        %87 = sbr.rel (%p85) target = $region20
      $region19: #{dkd_forward.3} parent=15 // pred_region
        %p88 = scmp.lt.s32.totalorder %s14, 1
        %s89 = scalar_select %p88, %s14, 1
        %s90 = smul.addr %s89, 128
        %s91 = smul.addr %s90, 8
        %s92 = scalar_lea.vmem %s1, %s91
      $region20: #{dkd_forward.3} parent=15 // pred_fallthru
        _
    $region16: #{dkd_forward.3} parent=5 // pred_fallthru
      _
    %p93 = scmp.le.s32.totalorder 1, %s14
    %p94 = scmp.lt.s32.totalorder %s14, 3
    %p95 = pnand %p93, %p94
    %p96 = pneg %p95
    // Predicated region
    $region21: #{dkd_forward.3} parent=5 // pred_check
      _
    $region22: #{dkd_forward.3} parent=5 // pred_check_branch
      %98 = sbr.rel (%p95) target = $region24
    $region23: #{dkd_forward.3} parent=5 // pred_region
      %s99 = ssub.s32 %s14, 1
      %p100 = scmp.lt.s32.totalorder %s19, 1
      %s101 = scalar_select %p100, %s19, 1
      %s102 = smul.addr %s101, 128
      %s103 = smul.addr %s102, 8
      %s104 = scalar_lea.vmem %s1, %s103
      %p105 = pneg %p40
      %p106 = pneg %p37
      %p107 = pneg %p66
      %p108 = pneg %p63
      %p109 = scmp.lt.s32.totalorder %s19, 1
      %s110 = scalar_select %p109, %s19, 1
      %s111 = smul.addr %s110, 16
      %s112 = smul.addr %s111, 8
      %s113 = scalar_lea.vmem %s2, %s112
      %p114 = scmp.lt.s32.totalorder %s19, 1
      %s115 = scalar_select %p114, %s19, 1
      %s116 = smul.addr %s115, 128
      %s117 = smul.addr %s116, 8
      %s118 = scalar_lea.vmem %s1, %s117
      %p119 = scmp.lt.s32.totalorder %s19, 1
      %s120 = scalar_select %p119, %s19, 1
      %s121 = smul.addr %s120, 16
      %s122 = smul.addr %s121, 8
      %s123 = scalar_lea.vmem %s2, %s122
      loop: start=0, step=1, limit=128
      $region25: #{dkd_forward.3} parent=23 // loop_pre_header
        _
      $region26: #{dkd_forward.3} parent=23 // loop_header
        %s125 = sphi 0, %s129
        %p126 = scmp.ge.s32.totalorder %s125, 128
      $region27: #{dkd_forward.3} parent=23 // loop_header_branch
        %128 = sbr.rel (%p126) target = $region31
      $region28: #{dkd_forward.3} parent=23 // loop_body
        %s130 = sshra.s32 %s125, 7
        %s131 = sand.u32 %s125, 127
        %s132 = sadd.s32 %s130, %s19
        %s133 = smul.u32 %s132, 128
        %s134 = sshra.s32 %s125, 7
        %s135 = sand.u32 %s125, 127
        %s136 = sadd.s32 %s133, %s135
        %s137 = sld [smem:[#allocation3 + %s136]]
        %s138 = scalar_lea.vmem %s118, %s137
        %v139 = vld [vmem:[%s138] sm:$0x1]
        %v140 = vmul.f32 %v139, %v139
        %vm141 = vcmask 1040384
        %v142 = vsel %vm141, %v140, 0.0
        %143 = vadd.xlane.f32.xlu0 %v142
        %v144 = vpop.xlane.xlu0 %143
        %v145 = vmax.f32 %v144, 1e-24
        %v146 = vrsqrt.pop %v145
        %v147 = vmul.f32 %v139, %v146
        %s148 = scalar_lea.vmem %s123, %s125
        %149 = vst [vmem:[%s148] sm:$0x1] %v147
      $region29: #{dkd_forward.3} parent=23 // loop_footer
        %s129 = sadd.s32 1, %s125
      $region30: #{dkd_forward.3} parent=23 // loop_footer_branch
        %124 = sbr.rel target = $region26
      $region31: #{dkd_forward.3} parent=23 // loop_exit
        _
      %p150 = scmp.lt.s32.totalorder %s19, 1
      %s151 = scalar_select %p150, %s19, 1
      %s152 = smul.addr %s151, 16
      %s153 = smul.addr %s152, 8
      %s154 = scalar_lea.vmem %s2, %s153
      // Predicated region
      $region32: #{dkd_forward.3} parent=23 // pred_check
        %p155 = pneg %p63
      $region33: #{dkd_forward.3} parent=23 // pred_check_branch
        %157 = sbr.rel (%p155) target = $region35
      $region34: #{dkd_forward.3} parent=23 // pred_region
        _
      $region35: #{dkd_forward.3} parent=23 // pred_fallthru
        _
    $region24: #{dkd_forward.3} parent=5 // pred_fallthru
      _
    %p158 = scmp.le.s32.totalorder 2, %s14
    // Predicated region
    $region36: #{dkd_forward.3} parent=5 // pred_check
      %p159 = pneg %p158
    $region37: #{dkd_forward.3} parent=5 // pred_check_branch
      %161 = sbr.rel (%p159) target = $region39
    $region38: #{dkd_forward.3} parent=5 // pred_region
      %s162 = ssub.s32 %s14, 2
      // Predicated region
      $region40: #{dkd_forward.3} parent=38 // pred_check
        %p163 = pneg %p69
      $region41: #{dkd_forward.3} parent=38 // pred_check_branch
        %165 = sbr.rel (%p163) target = $region43
      $region42: #{dkd_forward.3} parent=38 // pred_region
        %p166 = scmp.lt.s32.totalorder %s20, 1
        %s167 = scalar_select %p166, %s20, 1
        %s168 = smul.addr %s167, 16
        %s169 = smul.addr %s168, 8
        %s170 = scalar_lea.vmem %s2, %s169
      $region43: #{dkd_forward.3} parent=38 // pred_fallthru
        _
    $region39: #{dkd_forward.3} parent=5 // pred_fallthru
      _
  $region6: #{dkd_forward.3} parent=0 // loop_footer
    %s18 = sadd.s32 1, %s14
  $region7: #{dkd_forward.3} parent=0 // loop_footer_branch
    %13 = sbr.rel target = $region3
  $region8: #{dkd_forward.3} parent=0 // loop_exit
    _

// kernel: dkd_forward.2
$region0: #{dkd_forward.2}
  #allocation0 [shape = 'u32[]', space=smem, size = 0x4, offset = 0x4, fixed_abs, tag = 'smem constant byte address 0x4 - core index']
  #allocation1 [shape = 'u32[144,128]{1,0:T(1,128)}', space=vmem, size = 0x12000, scoped, tag = 'internal scratch']
  %s0 = inlined_call_operand.vmem [shape: f32[2,32,32], index: 0, kind: input, shape index: {}]
  %s1 = inlined_call_operand.vmem [shape: f32[2,32,32], index: 1, kind: output, shape index: {}]
  %s2 = sld [smem:[#allocation0]]
  $region37: #{dkd_forward.2} parent=0
    _
  %s4 = ssub.s32 1, %s2
  %s5 = scalar_select 0, %s4, %s2
  loop: start=0, step=1, limit=4
  $region2: #{dkd_forward.2} parent=0 // loop_pre_header
    _
  $region3: #{dkd_forward.2} parent=0 // loop_header
    %s7 = sphi 0, %s11
    %p8 = scmp.ge.s32.totalorder %s7, 4
    %s17 = sphi 0, %s19
    %s20 = sphi 0, %s17
    %s21 = sphi 0, %s20
    %s37 = sphi 0, %s21
    %s43 = sphi 0, %s45
    %s46 = sphi 0, %s43
    %s47 = sphi 0, %s46
    %s63 = sphi 0, %s47
  $region4: #{dkd_forward.2} parent=0 // loop_header_branch
    %10 = sbr.rel (%p8) target = $region8
  $region5: #{dkd_forward.2} parent=0 // loop_body
    %s12 = ssub.s32 %s7, 1
    %s13 = ssub.s32 %s7, 2
    %s14 = sadd.s32 %s7, 1
    %s15 = ssub.s32 %s7, %s14
    %p16 = scmp.eq.s32.totalorder %s15, 0
    %s18 = sadd.s32 %s17, 1
    %s19 = scalar_select %p16, %s17, %s18
    %p22 = pneg %p16
    %p23 = scmp.eq.s32.totalorder %s7, 1
    %p24 = por %p22, %p23
    %p25 = scmp.ne.s32.totalorder %s17, %s20
    %p26 = scmp.eq.s32.totalorder %s7, 0
    %p27 = por %p25, %p26
    %p28 = scmp.ne.s32.totalorder %s17, %s20
    %p29 = scmp.eq.s32.totalorder %s12, 1
    %p30 = por %p28, %p29
    %p31 = scmp.ne.s32.totalorder %s20, %s21
    %p32 = scmp.eq.s32.totalorder %s12, 0
    %p33 = por %p31, %p32
    %p34 = scmp.ne.s32.totalorder %s20, %s21
    %p35 = scmp.eq.s32.totalorder %s13, 1
    %p36 = por %p34, %p35
    %p38 = scmp.ne.s32.totalorder %s21, %s37
    %p39 = scmp.eq.s32.totalorder %s13, 0
    %p40 = por %p38, %p39
    %s41 = ssub.s32 %s7, %s14
    %p42 = scmp.eq.s32.totalorder %s41, 0
    %s44 = sadd.s32 %s43, 1
    %s45 = scalar_select %p42, %s43, %s44
    %p48 = pneg %p42
    %p49 = scmp.eq.s32.totalorder %s7, 1
    %p50 = por %p48, %p49
    %p51 = scmp.ne.s32.totalorder %s43, %s46
    %p52 = scmp.eq.s32.totalorder %s7, 0
    %p53 = por %p51, %p52
    %p54 = scmp.ne.s32.totalorder %s43, %s46
    %p55 = scmp.eq.s32.totalorder %s12, 1
    %p56 = por %p54, %p55
    %p57 = scmp.ne.s32.totalorder %s46, %s47
    %p58 = scmp.eq.s32.totalorder %s12, 0
    %p59 = por %p57, %p58
    %p60 = scmp.ne.s32.totalorder %s46, %s47
    %p61 = scmp.eq.s32.totalorder %s13, 1
    %p62 = por %p60, %p61
    %p64 = scmp.ne.s32.totalorder %s47, %s63
    %p65 = scmp.eq.s32.totalorder %s13, 0
    %p66 = por %p64, %p65
    %p67 = scmp.le.s32.totalorder 1, %s7
    %p68 = scmp.lt.s32.totalorder %s7, 3
    %p69 = pnand %p67, %p68
    %p70 = pneg %p69
    // Predicated region
    $region9: #{dkd_forward.2} parent=5 // pred_check
      _
    $region10: #{dkd_forward.2} parent=5 // pred_check_branch
      %72 = sbr.rel (%p69) target = $region12
    $region11: #{dkd_forward.2} parent=5 // pred_region
      %s73 = ssub.s32 %s7, 1
    $region12: #{dkd_forward.2} parent=5 // pred_fallthru
      _
    %p74 = scmp.lt.s32.totalorder %s7, 2
    // Predicated region
    $region13: #{dkd_forward.2} parent=5 // pred_check
      %p75 = pneg %p74
    $region14: #{dkd_forward.2} parent=5 // pred_check_branch
      %77 = sbr.rel (%p75) target = $region16
    $region15: #{dkd_forward.2} parent=5 // pred_region
      // Predicated region
      $region17: #{dkd_forward.2} parent=15 // pred_check
        %p78 = pneg %p27
      $region18: #{dkd_forward.2} parent=15 // pred_check_branch
        %80 = sbr.rel (%p78) target = $region20
      $region19: #{dkd_forward.2} parent=15 // pred_region
        %p81 = scmp.lt.s32.totalorder %s7, 1
        %s82 = scalar_select %p81, %s7, 1
        %s83 = smul.addr %s82, 4
        %s84 = smul.addr %s83, 8
        %s85 = scalar_lea.vmem %s0, %s84
      $region20: #{dkd_forward.2} parent=15 // pred_fallthru
        _
    $region16: #{dkd_forward.2} parent=5 // pred_fallthru
      _
    %p86 = scmp.le.s32.totalorder 1, %s7
    %p87 = scmp.lt.s32.totalorder %s7, 3
    %p88 = pnand %p86, %p87
    %p89 = pneg %p88
    // Predicated region
    $region21: #{dkd_forward.2} parent=5 // pred_check
      _
    $region22: #{dkd_forward.2} parent=5 // pred_check_branch
      %91 = sbr.rel (%p88) target = $region24
    $region23: #{dkd_forward.2} parent=5 // pred_region
      %s92 = ssub.s32 %s7, 1
      %p93 = scmp.lt.s32.totalorder %s12, 1
      %s94 = scalar_select %p93, %s12, 1
      %s95 = smul.addr %s94, 4
      %s96 = smul.addr %s95, 8
      %s97 = scalar_lea.vmem %s0, %s96
      %p98 = pneg %p33
      %p99 = pneg %p30
      %p100 = pneg %p59
      %p101 = pneg %p56
      %p102 = scmp.lt.s32.totalorder %s12, 1
      %s103 = scalar_select %p102, %s12, 1
      %s104 = smul.addr %s103, 4
      %s105 = smul.addr %s104, 8
      %s106 = scalar_lea.vmem %s1, %s105
      %p107 = scmp.lt.s32.totalorder %s12, 1
      %s108 = scalar_select %p107, %s12, 1
      %s109 = smul.addr %s108, 4
      %s110 = smul.addr %s109, 8
      %s111 = scalar_lea.vmem %s0, %s110
      %p112 = scmp.lt.s32.totalorder %s12, 1
      %s113 = scalar_select %p112, %s12, 1
      %s114 = smul.addr %s113, 4
      %s115 = smul.addr %s114, 8
      %s116 = scalar_lea.vmem %s1, %s115
      %v117 = vld [vmem:[%s111] sm:$0xff]
      %v118 = vld [vmem:[%s111 + $0x8] sm:$0xff]
      %v119 = vld [vmem:[%s111 + $0x10] sm:$0xff]
      %v120 = vld [vmem:[%s111 + $0x18] sm:$0xff]
      %v121 = vlaneseq
      %v122 = vand.u32 %v121, 127
      %v123 = vadd.s32 %v122, 1
      %vm124 = vcmp.lt.s32.totalorder %v123, 32
      %vm125 = vcmask 1047808
      %126 = vrot.lane.b32.xlu0 %v117, 32
      %v127 = vpop.permute.xlu0 %126
      %v128 = vsel %vm125, %v127, %v117
      %129 = vrot.lane.b32.xlu0 %v118, 32
      %v130 = vpop.permute.xlu0 %129
      %v131 = vsel %vm125, %v130, %v118
      %132 = vrot.lane.b32.xlu0 %v119, 32
      %v133 = vpop.permute.xlu0 %132
      %v134 = vsel %vm125, %v133, %v119
      %135 = vrot.lane.b32.xlu0 %v120, 32
      %v136 = vpop.permute.xlu0 %135
      %v137 = vsel %vm125, %v136, %v120
      %138 = vrot.lane.b32.xlu0 %v128, 32
      %v139 = vpop.permute.xlu0 %138
      %140 = vrot.lane.b32.xlu0 %v131, 32
      %v141 = vpop.permute.xlu0 %140
      %142 = vrot.lane.b32.xlu0 %v134, 32
      %v143 = vpop.permute.xlu0 %142
      %144 = vrot.lane.b32.xlu0 %v137, 32
      %v145 = vpop.permute.xlu0 %144
      %v146 = vsel %vm125, %v139, %v117
      %v147 = vsel %vm125, %v141, %v118
      %v148 = vsel %vm125, %v143, %v119
      %v149 = vsel %vm125, %v145, %v120
      %154 = vrot.lane.b32.xlu0 %v146, 127
      %v155 = vpop.permute.xlu0 %154
      %156 = vrot.lane.b32.xlu0 %v147, 127
      %v157 = vpop.permute.xlu0 %156
      %158 = vrot.lane.b32.xlu0 %v148, 127
      %v159 = vpop.permute.xlu0 %158
      %160 = vrot.lane.b32.xlu0 %v149, 127
      %v161 = vpop.permute.xlu0 %160
      %v166 = vsel %vm124, %v155, -inf
      %v167 = vsel %vm124, %v157, -inf
      %v168 = vsel %vm124, %v159, -inf
      %v169 = vsel %vm124, %v161, -inf
      %v170 = vsub.s32 %v122, 1
      %vm171 = vcmp.ge.s32.totalorder %v170, 0
      %172 = vrot.lane.b32.xlu0 %v146, 97
      %v173 = vpop.permute.xlu0 %172
      %174 = vrot.lane.b32.xlu0 %v147, 97
      %v175 = vpop.permute.xlu0 %174
      %176 = vrot.lane.b32.xlu0 %v148, 97
      %v177 = vpop.permute.xlu0 %176
      %178 = vrot.lane.b32.xlu0 %v149, 97
      %v179 = vpop.permute.xlu0 %178
      %v184 = vsel %vm171, %v173, -inf
      %v185 = vsel %vm171, %v175, -inf
      %v186 = vsel %vm171, %v177, -inf
      %v187 = vsel %vm171, %v179, -inf
      %v188 = vmax.f32 %v166, %v184
      %v189 = vmax.f32 %v167, %v185
      %v190 = vmax.f32 %v168, %v186
      %v191 = vmax.f32 %v169, %v187
      %v192 = vmax.f32 %v117, %v188
      %v193 = vmax.f32 %v118, %v189
      %v194 = vmax.f32 %v119, %v190
      %v195 = vmax.f32 %v120, %v191
      %v196 = vadd.s32 %v122, 2
      %vm197 = vcmp.lt.s32.totalorder %v196, 32
      %198 = vrot.lane.b32.xlu0 %v146, 126
      %v199 = vpop.permute.xlu0 %198
      %200 = vrot.lane.b32.xlu0 %v147, 126
      %v201 = vpop.permute.xlu0 %200
      %202 = vrot.lane.b32.xlu0 %v148, 126
      %v203 = vpop.permute.xlu0 %202
      %204 = vrot.lane.b32.xlu0 %v149, 126
      %v205 = vpop.permute.xlu0 %204
      %v210 = vsel %vm197, %v199, -inf
      %v211 = vsel %vm197, %v201, -inf
      %v212 = vsel %vm197, %v203, -inf
      %v213 = vsel %vm197, %v205, -inf
      %v214 = vsub.s32 %v122, 2
      %vm215 = vcmp.ge.s32.totalorder %v214, 0
      %216 = vrot.lane.b32.xlu0 %v146, 98
      %v217 = vpop.permute.xlu0 %216
      %218 = vrot.lane.b32.xlu0 %v147, 98
      %v219 = vpop.permute.xlu0 %218
      %220 = vrot.lane.b32.xlu0 %v148, 98
      %v221 = vpop.permute.xlu0 %220
      %222 = vrot.lane.b32.xlu0 %v149, 98
      %v223 = vpop.permute.xlu0 %222
      %v228 = vsel %vm215, %v217, -inf
      %v229 = vsel %vm215, %v219, -inf
      %v230 = vsel %vm215, %v221, -inf
      %v231 = vsel %vm215, %v223, -inf
      %v232 = vmax.f32 %v210, %v228
      %v233 = vmax.f32 %v211, %v229
      %v234 = vmax.f32 %v212, %v230
      %v235 = vmax.f32 %v213, %v231
      %v236 = vmax.f32 %v192, %v232
      %v237 = vmax.f32 %v193, %v233
      %v238 = vmax.f32 %v194, %v234
      %v239 = vmax.f32 %v195, %v235
      %v240 = vlaneseq
      %v241 = vshrl.u32 %v240, 7
      %v242 = vadd.s32 %v241, 8
      %v243 = vadd.s32 %v241, 16
      %v244 = vadd.s32 %v241, 24
      %v245 = vadd.s32 %v241, 1
      %v246 = vadd.s32 %v242, 1
      %v247 = vadd.s32 %v243, 1
      %v248 = vadd.s32 %v244, 1
      %vm249 = vcmp.lt.s32.totalorder %v245, 32
      %vm250 = vcmp.lt.s32.totalorder %v246, 32
      %vm251 = vcmp.lt.s32.totalorder %v247, 32
      %vm252 = vcmp.lt.s32.totalorder %v248, 32
      %v253 = vrot.slane %v236, 1
      %v254 = vrot.slane %v237, 1
      %v255 = vrot.slane %v238, 1
      %v256 = vrot.slane %v239, 1
      %vm257 = vcmp.lt.s32.totalorder %v241, 7
      %v258 = vsel %vm257, %v255, %v256
      %v259 = vsel %vm257, %v254, %v255
      %v260 = vsel %vm257, %v253, %v254
      %v261 = vsel %vm257, %v256, %v253
      %v262 = vsel %vm249, %v260, -inf
      %v263 = vsel %vm250, %v259, -inf
      %v264 = vsel %vm251, %v258, -inf
      %v265 = vsel %vm252, %v261, -inf
      %v266 = vsub.s32 %v241, 1
      %v267 = vsub.s32 %v242, 1
      %v268 = vsub.s32 %v243, 1
      %v269 = vsub.s32 %v244, 1
      %vm270 = vcmp.ge.s32.totalorder %v266, 0
      %vm271 = vcmp.ge.s32.totalorder %v267, 0
      %vm272 = vcmp.ge.s32.totalorder %v268, 0
      %vm273 = vcmp.ge.s32.totalorder %v269, 0
      %v274 = vrot.slane %v236, 7
      %v275 = vrot.slane %v237, 7
      %v276 = vrot.slane %v238, 7
      %v277 = vrot.slane %v239, 7
      %vm278 = vcmp.lt.s32.totalorder %v241, 1
      %v279 = vsel %vm278, %v276, %v277
      %v280 = vsel %vm278, %v275, %v276
      %v281 = vsel %vm278, %v274, %v275
      %v282 = vsel %vm278, %v277, %v274
      %v283 = vsel %vm270, %v282, -inf
      %v284 = vsel %vm271, %v281, -inf
      %v285 = vsel %vm272, %v280, -inf
      %v286 = vsel %vm273, %v279, -inf
      %v287 = vmax.f32 %v262, %v283
      %v288 = vmax.f32 %v263, %v284
      %v289 = vmax.f32 %v264, %v285
      %v290 = vmax.f32 %v265, %v286
      %v291 = vmax.f32 %v236, %v287
      %v292 = vmax.f32 %v237, %v288
      %v293 = vmax.f32 %v238, %v289
      %v294 = vmax.f32 %v239, %v290
      %v295 = vadd.s32 %v241, 2
      %v296 = vadd.s32 %v242, 2
      %v297 = vadd.s32 %v243, 2
      %v298 = vadd.s32 %v244, 2
      %vm299 = vcmp.lt.s32.totalorder %v295, 32
      %vm300 = vcmp.lt.s32.totalorder %v296, 32
      %vm301 = vcmp.lt.s32.totalorder %v297, 32
      %vm302 = vcmp.lt.s32.totalorder %v298, 32
      %v303 = vrot.slane %v236, 2
      %v304 = vrot.slane %v237, 2
      %v305 = vrot.slane %v238, 2
      %v306 = vrot.slane %v239, 2
      %vm307 = vcmp.lt.s32.totalorder %v241, 6
      %v308 = vsel %vm307, %v305, %v306
      %v309 = vsel %vm307, %v304, %v305
      %v310 = vsel %vm307, %v303, %v304
      %v311 = vsel %vm307, %v306, %v303
      %v312 = vsel %vm299, %v310, -inf
      %v313 = vsel %vm300, %v309, -inf
      %v314 = vsel %vm301, %v308, -inf
      %v315 = vsel %vm302, %v311, -inf
      %v316 = vsub.s32 %v241, 2
      %v317 = vsub.s32 %v242, 2
      %v318 = vsub.s32 %v243, 2
      %v319 = vsub.s32 %v244, 2
      %vm320 = vcmp.ge.s32.totalorder %v316, 0
      %vm321 = vcmp.ge.s32.totalorder %v317, 0
      %vm322 = vcmp.ge.s32.totalorder %v318, 0
      %vm323 = vcmp.ge.s32.totalorder %v319, 0
      %v324 = vrot.slane %v236, 6
      %v325 = vrot.slane %v237, 6
      %v326 = vrot.slane %v238, 6
      %v327 = vrot.slane %v239, 6
      %vm328 = vcmp.lt.s32.totalorder %v241, 2
      %v329 = vsel %vm328, %v326, %v327
      %v330 = vsel %vm328, %v325, %v326
      %v331 = vsel %vm328, %v324, %v325
      %v332 = vsel %vm328, %v327, %v324
      %v333 = vsel %vm320, %v332, -inf
      %v334 = vsel %vm321, %v331, -inf
      %v335 = vsel %vm322, %v330, -inf
      %v336 = vsel %vm323, %v329, -inf
      %v337 = vmax.f32 %v312, %v333
      %v338 = vmax.f32 %v313, %v334
      %v339 = vmax.f32 %v314, %v335
      %v340 = vmax.f32 %v315, %v336
      %v341 = vmax.f32 %v291, %v337
      %v342 = vmax.f32 %v292, %v338
      %v343 = vmax.f32 %v293, %v339
      %v344 = vmax.f32 %v294, %v340
      %vm345 = vcmp.eq.f32.partialorder %v117, %v341
      %vm346 = vcmp.eq.f32.partialorder %v118, %v342
      %vm347 = vcmp.eq.f32.partialorder %v119, %v343
      %vm348 = vcmp.eq.f32.partialorder %v120, %v344
      %v349 = vsel %vm345, 1, 0
      %v350 = vsel %vm346, 1, 0
      %v351 = vsel %vm347, 1, 0
      %v352 = vsel %vm348, 1, 0
      %v353 = vcvt.s32.f32 %v349
      %v354 = vcvt.s32.f32 %v350
      %v355 = vcvt.s32.f32 %v351
      %v356 = vcvt.s32.f32 %v352
      %357 = vrot.lane.b32.xlu0 %v353, 32
      %v358 = vpop.permute.xlu0 %357
      %v359 = vsel %vm125, %v358, %v353
      %360 = vrot.lane.b32.xlu0 %v354, 32
      %v361 = vpop.permute.xlu0 %360
      %v362 = vsel %vm125, %v361, %v354
      %363 = vrot.lane.b32.xlu0 %v355, 32
      %v364 = vpop.permute.xlu0 %363
      %v365 = vsel %vm125, %v364, %v355
      %366 = vrot.lane.b32.xlu0 %v356, 32
      %v367 = vpop.permute.xlu0 %366
      %v368 = vsel %vm125, %v367, %v356
      %369 = vrot.lane.b32.xlu0 %v359, 32
      %v370 = vpop.permute.xlu0 %369
      %371 = vrot.lane.b32.xlu0 %v362, 32
      %v372 = vpop.permute.xlu0 %371
      %373 = vrot.lane.b32.xlu0 %v365, 32
      %v374 = vpop.permute.xlu0 %373
      %375 = vrot.lane.b32.xlu0 %v368, 32
      %v376 = vpop.permute.xlu0 %375
      %v377 = vsel %vm125, %v370, %v353
      %v378 = vsel %vm125, %v372, %v354
      %v379 = vsel %vm125, %v374, %v355
      %v380 = vsel %vm125, %v376, %v356
      %385 = vrot.lane.b32.xlu0 %v377, 127
      %v386 = vpop.permute.xlu0 %385
      %387 = vrot.lane.b32.xlu0 %v378, 127
      %v388 = vpop.permute.xlu0 %387
      %389 = vrot.lane.b32.xlu0 %v379, 127
      %v390 = vpop.permute.xlu0 %389
      %391 = vrot.lane.b32.xlu0 %v380, 127
      %v392 = vpop.permute.xlu0 %391
      %v397 = vsel %vm124, %v386, -inf
      %v398 = vsel %vm124, %v388, -inf
      %v399 = vsel %vm124, %v390, -inf
      %v400 = vsel %vm124, %v392, -inf
      %401 = vrot.lane.b32.xlu0 %v377, 97
      %v402 = vpop.permute.xlu0 %401
      %403 = vrot.lane.b32.xlu0 %v378, 97
      %v404 = vpop.permute.xlu0 %403
      %405 = vrot.lane.b32.xlu0 %v379, 97
      %v406 = vpop.permute.xlu0 %405
      %407 = vrot.lane.b32.xlu0 %v380, 97
      %v408 = vpop.permute.xlu0 %407
      %v413 = vsel %vm171, %v402, -inf
      %v414 = vsel %vm171, %v404, -inf
      %v415 = vsel %vm171, %v406, -inf
      %v416 = vsel %vm171, %v408, -inf
      %v417 = vmax.f32 %v397, %v413
      %v418 = vmax.f32 %v398, %v414
      %v419 = vmax.f32 %v399, %v415
      %v420 = vmax.f32 %v400, %v416
      %v421 = vmax.f32 %v353, %v417
      %v422 = vmax.f32 %v354, %v418
      %v423 = vmax.f32 %v355, %v419
      %v424 = vmax.f32 %v356, %v420
      %425 = vrot.lane.b32.xlu0 %v377, 126
      %v426 = vpop.permute.xlu0 %425
      %427 = vrot.lane.b32.xlu0 %v378, 126
      %v428 = vpop.permute.xlu0 %427
      %429 = vrot.lane.b32.xlu0 %v379, 126
      %v430 = vpop.permute.xlu0 %429
      %431 = vrot.lane.b32.xlu0 %v380, 126
      %v432 = vpop.permute.xlu0 %431
      %v437 = vsel %vm197, %v426, -inf
      %v438 = vsel %vm197, %v428, -inf
      %v439 = vsel %vm197, %v430, -inf
      %v440 = vsel %vm197, %v432, -inf
      %441 = vrot.lane.b32.xlu0 %v377, 98
      %v442 = vpop.permute.xlu0 %441
      %443 = vrot.lane.b32.xlu0 %v378, 98
      %v444 = vpop.permute.xlu0 %443
      %445 = vrot.lane.b32.xlu0 %v379, 98
      %v446 = vpop.permute.xlu0 %445
      %447 = vrot.lane.b32.xlu0 %v380, 98
      %v448 = vpop.permute.xlu0 %447
      %v453 = vsel %vm215, %v442, -inf
      %v454 = vsel %vm215, %v444, -inf
      %v455 = vsel %vm215, %v446, -inf
      %v456 = vsel %vm215, %v448, -inf
      %v457 = vmax.f32 %v437, %v453
      %v458 = vmax.f32 %v438, %v454
      %v459 = vmax.f32 %v439, %v455
      %v460 = vmax.f32 %v440, %v456
      %v461 = vmax.f32 %v421, %v457
      %v462 = vmax.f32 %v422, %v458
      %v463 = vmax.f32 %v423, %v459
      %v464 = vmax.f32 %v424, %v460
      %v465 = vrot.slane %v461, 1
      %v466 = vrot.slane %v462, 1
      %v467 = vrot.slane %v463, 1
      %v468 = vrot.slane %v464, 1
      %v469 = vsel %vm257, %v467, %v468
      %v470 = vsel %vm257, %v466, %v467
      %v471 = vsel %vm257, %v465, %v466
      %v472 = vsel %vm257, %v468, %v465
      %v473 = vsel %vm249, %v471, -inf
      %v474 = vsel %vm250, %v470, -inf
      %v475 = vsel %vm251, %v469, -inf
      %v476 = vsel %vm252, %v472, -inf
      %v477 = vrot.slane %v461, 7
      %v478 = vrot.slane %v462, 7
      %v479 = vrot.slane %v463, 7
      %v480 = vrot.slane %v464, 7
      %v481 = vsel %vm278, %v479, %v480
      %v482 = vsel %vm278, %v478, %v479
      %v483 = vsel %vm278, %v477, %v478
      %v484 = vsel %vm278, %v480, %v477
      %v485 = vsel %vm270, %v484, -inf
      %v486 = vsel %vm271, %v483, -inf
      %v487 = vsel %vm272, %v482, -inf
      %v488 = vsel %vm273, %v481, -inf
      %v489 = vmax.f32 %v473, %v485
      %v490 = vmax.f32 %v474, %v486
      %v491 = vmax.f32 %v475, %v487
      %v492 = vmax.f32 %v476, %v488
      %v493 = vmax.f32 %v461, %v489
      %v494 = vmax.f32 %v462, %v490
      %v495 = vmax.f32 %v463, %v491
      %v496 = vmax.f32 %v464, %v492
      %v497 = vrot.slane %v461, 2
      %v498 = vrot.slane %v462, 2
      %v499 = vrot.slane %v463, 2
      %v500 = vrot.slane %v464, 2
      %v501 = vsel %vm307, %v499, %v500
      %v502 = vsel %vm307, %v498, %v499
      %v503 = vsel %vm307, %v497, %v498
      %v504 = vsel %vm307, %v500, %v497
      %v505 = vsel %vm299, %v503, -inf
      %v506 = vsel %vm300, %v502, -inf
      %v507 = vsel %vm301, %v501, -inf
      %v508 = vsel %vm302, %v504, -inf
      %v509 = vrot.slane %v461, 6
      %v510 = vrot.slane %v462, 6
      %v511 = vrot.slane %v463, 6
      %v512 = vrot.slane %v464, 6
      %v513 = vsel %vm328, %v511, %v512
      %v514 = vsel %vm328, %v510, %v511
      %v515 = vsel %vm328, %v509, %v510
      %v516 = vsel %vm328, %v512, %v509
      %v517 = vsel %vm320, %v516, -inf
      %v518 = vsel %vm321, %v515, -inf
      %v519 = vsel %vm322, %v514, -inf
      %v520 = vsel %vm323, %v513, -inf
      %v521 = vmax.f32 %v505, %v517
      %v522 = vmax.f32 %v506, %v518
      %v523 = vmax.f32 %v507, %v519
      %v524 = vmax.f32 %v508, %v520
      %v525 = vmax.f32 %v493, %v521
      %v526 = vmax.f32 %v494, %v522
      %v527 = vmax.f32 %v495, %v523
      %v528 = vmax.f32 %v496, %v524
      %vm529 = vcmp.gt.f32.partialorder %v525, 0.0
      %vm530 = vcmp.gt.f32.partialorder %v526, 0.0
      %vm531 = vcmp.gt.f32.partialorder %v527, 0.0
      %vm532 = vcmp.gt.f32.partialorder %v528, 0.0
      %v533 = vsel %vm529, 0.0, %v117
      %v534 = vsel %vm530, 0.0, %v118
      %v535 = vsel %vm531, 0.0, %v119
      %v536 = vsel %vm532, 0.0, %v120
      %537 = vrot.lane.b32.xlu0 %v533, 32
      %v538 = vpop.permute.xlu0 %537
      %v539 = vsel %vm125, %v538, %v533
      %540 = vrot.lane.b32.xlu0 %v534, 32
      %v541 = vpop.permute.xlu0 %540
      %v542 = vsel %vm125, %v541, %v534
      %543 = vrot.lane.b32.xlu0 %v535, 32
      %v544 = vpop.permute.xlu0 %543
      %v545 = vsel %vm125, %v544, %v535
      %546 = vrot.lane.b32.xlu0 %v536, 32
      %v547 = vpop.permute.xlu0 %546
      %v548 = vsel %vm125, %v547, %v536
      %549 = vrot.lane.b32.xlu0 %v539, 32
      %v550 = vpop.permute.xlu0 %549
      %551 = vrot.lane.b32.xlu0 %v542, 32
      %v552 = vpop.permute.xlu0 %551
      %553 = vrot.lane.b32.xlu0 %v545, 32
      %v554 = vpop.permute.xlu0 %553
      %555 = vrot.lane.b32.xlu0 %v548, 32
      %v556 = vpop.permute.xlu0 %555
      %v557 = vsel %vm125, %v550, %v533
      %v558 = vsel %vm125, %v552, %v534
      %v559 = vsel %vm125, %v554, %v535
      %v560 = vsel %vm125, %v556, %v536
      %565 = vrot.lane.b32.xlu0 %v557, 127
      %v566 = vpop.permute.xlu0 %565
      %567 = vrot.lane.b32.xlu0 %v558, 127
      %v568 = vpop.permute.xlu0 %567
      %569 = vrot.lane.b32.xlu0 %v559, 127
      %v570 = vpop.permute.xlu0 %569
      %571 = vrot.lane.b32.xlu0 %v560, 127
      %v572 = vpop.permute.xlu0 %571
      %v577 = vsel %vm124, %v566, -inf
      %v578 = vsel %vm124, %v568, -inf
      %v579 = vsel %vm124, %v570, -inf
      %v580 = vsel %vm124, %v572, -inf
      %581 = vrot.lane.b32.xlu0 %v557, 97
      %v582 = vpop.permute.xlu0 %581
      %583 = vrot.lane.b32.xlu0 %v558, 97
      %v584 = vpop.permute.xlu0 %583
      %585 = vrot.lane.b32.xlu0 %v559, 97
      %v586 = vpop.permute.xlu0 %585
      %587 = vrot.lane.b32.xlu0 %v560, 97
      %v588 = vpop.permute.xlu0 %587
      %v593 = vsel %vm171, %v582, -inf
      %v594 = vsel %vm171, %v584, -inf
      %v595 = vsel %vm171, %v586, -inf
      %v596 = vsel %vm171, %v588, -inf
      %v597 = vmax.f32 %v577, %v593
      %v598 = vmax.f32 %v578, %v594
      %v599 = vmax.f32 %v579, %v595
      %v600 = vmax.f32 %v580, %v596
      %v601 = vmax.f32 %v533, %v597
      %v602 = vmax.f32 %v534, %v598
      %v603 = vmax.f32 %v535, %v599
      %v604 = vmax.f32 %v536, %v600
      %605 = vrot.lane.b32.xlu0 %v557, 126
      %v606 = vpop.permute.xlu0 %605
      %607 = vrot.lane.b32.xlu0 %v558, 126
      %v608 = vpop.permute.xlu0 %607
      %609 = vrot.lane.b32.xlu0 %v559, 126
      %v610 = vpop.permute.xlu0 %609
      %611 = vrot.lane.b32.xlu0 %v560, 126
      %v612 = vpop.permute.xlu0 %611
      %v617 = vsel %vm197, %v606, -inf
      %v618 = vsel %vm197, %v608, -inf
      %v619 = vsel %vm197, %v610, -inf
      %v620 = vsel %vm197, %v612, -inf
      %621 = vrot.lane.b32.xlu0 %v557, 98
      %v622 = vpop.permute.xlu0 %621
      %623 = vrot.lane.b32.xlu0 %v558, 98
      %v624 = vpop.permute.xlu0 %623
      %625 = vrot.lane.b32.xlu0 %v559, 98
      %v626 = vpop.permute.xlu0 %625
      %627 = vrot.lane.b32.xlu0 %v560, 98
      %v628 = vpop.permute.xlu0 %627
      %v633 = vsel %vm215, %v622, -inf
      %v634 = vsel %vm215, %v624, -inf
      %v635 = vsel %vm215, %v626, -inf
      %v636 = vsel %vm215, %v628, -inf
      %v637 = vmax.f32 %v617, %v633
      %v638 = vmax.f32 %v618, %v634
      %v639 = vmax.f32 %v619, %v635
      %v640 = vmax.f32 %v620, %v636
      %v641 = vmax.f32 %v601, %v637
      %v642 = vmax.f32 %v602, %v638
      %v643 = vmax.f32 %v603, %v639
      %v644 = vmax.f32 %v604, %v640
      %v645 = vrot.slane %v641, 1
      %v646 = vrot.slane %v642, 1
      %v647 = vrot.slane %v643, 1
      %v648 = vrot.slane %v644, 1
      %v649 = vsel %vm257, %v647, %v648
      %v650 = vsel %vm257, %v646, %v647
      %v651 = vsel %vm257, %v645, %v646
      %v652 = vsel %vm257, %v648, %v645
      %v653 = vsel %vm249, %v651, -inf
      %v654 = vsel %vm250, %v650, -inf
      %v655 = vsel %vm251, %v649, -inf
      %v656 = vsel %vm252, %v652, -inf
      %v657 = vrot.slane %v641, 7
      %v658 = vrot.slane %v642, 7
      %v659 = vrot.slane %v643, 7
      %v660 = vrot.slane %v644, 7
      %v661 = vsel %vm278, %v659, %v660
      %v662 = vsel %vm278, %v658, %v659
      %v663 = vsel %vm278, %v657, %v658
      %v664 = vsel %vm278, %v660, %v657
      %v665 = vsel %vm270, %v664, -inf
      %v666 = vsel %vm271, %v663, -inf
      %v667 = vsel %vm272, %v662, -inf
      %v668 = vsel %vm273, %v661, -inf
      %v669 = vmax.f32 %v653, %v665
      %v670 = vmax.f32 %v654, %v666
      %v671 = vmax.f32 %v655, %v667
      %v672 = vmax.f32 %v656, %v668
      %v673 = vmax.f32 %v641, %v669
      %v674 = vmax.f32 %v642, %v670
      %v675 = vmax.f32 %v643, %v671
      %v676 = vmax.f32 %v644, %v672
      %v677 = vrot.slane %v641, 2
      %v678 = vrot.slane %v642, 2
      %v679 = vrot.slane %v643, 2
      %v680 = vrot.slane %v644, 2
      %v681 = vsel %vm307, %v679, %v680
      %v682 = vsel %vm307, %v678, %v679
      %v683 = vsel %vm307, %v677, %v678
      %v684 = vsel %vm307, %v680, %v677
      %v685 = vsel %vm299, %v683, -inf
      %v686 = vsel %vm300, %v682, -inf
      %v687 = vsel %vm301, %v681, -inf
      %v688 = vsel %vm302, %v684, -inf
      %v689 = vrot.slane %v641, 6
      %v690 = vrot.slane %v642, 6
      %v691 = vrot.slane %v643, 6
      %v692 = vrot.slane %v644, 6
      %v693 = vsel %vm328, %v691, %v692
      %v694 = vsel %vm328, %v690, %v691
      %v695 = vsel %vm328, %v689, %v690
      %v696 = vsel %vm328, %v692, %v689
      %v697 = vsel %vm320, %v696, -inf
      %v698 = vsel %vm321, %v695, -inf
      %v699 = vsel %vm322, %v694, -inf
      %v700 = vsel %vm323, %v693, -inf
      %v701 = vmax.f32 %v685, %v697
      %v702 = vmax.f32 %v686, %v698
      %v703 = vmax.f32 %v687, %v699
      %v704 = vmax.f32 %v688, %v700
      %v705 = vmax.f32 %v673, %v701
      %v706 = vmax.f32 %v674, %v702
      %v707 = vmax.f32 %v675, %v703
      %v708 = vmax.f32 %v676, %v704
      %vm709 = vcmp.eq.f32.partialorder %v533, %v705
      %vm710 = vcmp.eq.f32.partialorder %v534, %v706
      %vm711 = vcmp.eq.f32.partialorder %v535, %v707
      %vm712 = vcmp.eq.f32.partialorder %v536, %v708
      %vm713 = vmxor %vm529, 1
      %vm714 = vmxor %vm530, 1
      %vm715 = vmxor %vm531, 1
      %vm716 = vmxor %vm532, 1
      %vm717 = vmand %vm709, %vm713
      %vm718 = vmand %vm710, %vm714
      %vm719 = vmand %vm711, %vm715
      %vm720 = vmand %vm712, %vm716
      %vm721 = vmor %vm345, %vm717
      %vm722 = vmor %vm346, %vm718
      %vm723 = vmor %vm347, %vm719
      %vm724 = vmor %vm348, %vm720
      %v725 = vsel %vm721, 1, 0
      %v726 = vsel %vm722, 1, 0
      %v727 = vsel %vm723, 1, 0
      %v728 = vsel %vm724, 1, 0
      %v729 = vcvt.s32.f32 %v725
      %v730 = vcvt.s32.f32 %v726
      %v731 = vcvt.s32.f32 %v727
      %v732 = vcvt.s32.f32 %v728
      %733 = vrot.lane.b32.xlu0 %v729, 32
      %v734 = vpop.permute.xlu0 %733
      %v735 = vsel %vm125, %v734, %v729
      %736 = vrot.lane.b32.xlu0 %v730, 32
      %v737 = vpop.permute.xlu0 %736
      %v738 = vsel %vm125, %v737, %v730
      %739 = vrot.lane.b32.xlu0 %v731, 32
      %v740 = vpop.permute.xlu0 %739
      %v741 = vsel %vm125, %v740, %v731
      %742 = vrot.lane.b32.xlu0 %v732, 32
      %v743 = vpop.permute.xlu0 %742
      %v744 = vsel %vm125, %v743, %v732
      %745 = vrot.lane.b32.xlu0 %v735, 32
      %v746 = vpop.permute.xlu0 %745
      %747 = vrot.lane.b32.xlu0 %v738, 32
      %v748 = vpop.permute.xlu0 %747
      %749 = vrot.lane.b32.xlu0 %v741, 32
      %v750 = vpop.permute.xlu0 %749
      %751 = vrot.lane.b32.xlu0 %v744, 32
      %v752 = vpop.permute.xlu0 %751
      %v753 = vsel %vm125, %v746, %v729
      %v754 = vsel %vm125, %v748, %v730
      %v755 = vsel %vm125, %v750, %v731
      %v756 = vsel %vm125, %v752, %v732
      %761 = vrot.lane.b32.xlu0 %v753, 127
      %v762 = vpop.permute.xlu0 %761
      %763 = vrot.lane.b32.xlu0 %v754, 127
      %v764 = vpop.permute.xlu0 %763
      %765 = vrot.lane.b32.xlu0 %v755, 127
      %v766 = vpop.permute.xlu0 %765
      %767 = vrot.lane.b32.xlu0 %v756, 127
      %v768 = vpop.permute.xlu0 %767
      %v773 = vsel %vm124, %v762, -inf
      %v774 = vsel %vm124, %v764, -inf
      %v775 = vsel %vm124, %v766, -inf
      %v776 = vsel %vm124, %v768, -inf
      %777 = vrot.lane.b32.xlu0 %v753, 97
      %v778 = vpop.permute.xlu0 %777
      %779 = vrot.lane.b32.xlu0 %v754, 97
      %v780 = vpop.permute.xlu0 %779
      %781 = vrot.lane.b32.xlu0 %v755, 97
      %v782 = vpop.permute.xlu0 %781
      %783 = vrot.lane.b32.xlu0 %v756, 97
      %v784 = vpop.permute.xlu0 %783
      %v789 = vsel %vm171, %v778, -inf
      %v790 = vsel %vm171, %v780, -inf
      %v791 = vsel %vm171, %v782, -inf
      %v792 = vsel %vm171, %v784, -inf
      %v793 = vmax.f32 %v773, %v789
      %v794 = vmax.f32 %v774, %v790
      %v795 = vmax.f32 %v775, %v791
      %v796 = vmax.f32 %v776, %v792
      %v797 = vmax.f32 %v729, %v793
      %v798 = vmax.f32 %v730, %v794
      %v799 = vmax.f32 %v731, %v795
      %v800 = vmax.f32 %v732, %v796
      %801 = vrot.lane.b32.xlu0 %v753, 126
      %v802 = vpop.permute.xlu0 %801
      %803 = vrot.lane.b32.xlu0 %v754, 126
      %v804 = vpop.permute.xlu0 %803
      %805 = vrot.lane.b32.xlu0 %v755, 126
      %v806 = vpop.permute.xlu0 %805
      %807 = vrot.lane.b32.xlu0 %v756, 126
      %v808 = vpop.permute.xlu0 %807
      %v813 = vsel %vm197, %v802, -inf
      %v814 = vsel %vm197, %v804, -inf
      %v815 = vsel %vm197, %v806, -inf
      %v816 = vsel %vm197, %v808, -inf
      %817 = vrot.lane.b32.xlu0 %v753, 98
      %v818 = vpop.permute.xlu0 %817
      %819 = vrot.lane.b32.xlu0 %v754, 98
      %v820 = vpop.permute.xlu0 %819
      %821 = vrot.lane.b32.xlu0 %v755, 98
      %v822 = vpop.permute.xlu0 %821
      %823 = vrot.lane.b32.xlu0 %v756, 98
      %v824 = vpop.permute.xlu0 %823
      %v829 = vsel %vm215, %v818, -inf
      %v830 = vsel %vm215, %v820, -inf
      %v831 = vsel %vm215, %v822, -inf
      %v832 = vsel %vm215, %v824, -inf
      %v833 = vmax.f32 %v813, %v829
      %v834 = vmax.f32 %v814, %v830
      %v835 = vmax.f32 %v815, %v831
      %v836 = vmax.f32 %v816, %v832
      %v837 = vmax.f32 %v797, %v833
      %v838 = vmax.f32 %v798, %v834
      %v839 = vmax.f32 %v799, %v835
      %v840 = vmax.f32 %v800, %v836
      %v841 = vrot.slane %v837, 1
      %v842 = vrot.slane %v838, 1
      %v843 = vrot.slane %v839, 1
      %v844 = vrot.slane %v840, 1
      %v845 = vsel %vm257, %v843, %v844
      %v846 = vsel %vm257, %v842, %v843
      %v847 = vsel %vm257, %v841, %v842
      %v848 = vsel %vm257, %v844, %v841
      %v849 = vsel %vm249, %v847, -inf
      %v850 = vsel %vm250, %v846, -inf
      %v851 = vsel %vm251, %v845, -inf
      %v852 = vsel %vm252, %v848, -inf
      %v853 = vrot.slane %v837, 7
      %v854 = vrot.slane %v838, 7
      %v855 = vrot.slane %v839, 7
      %v856 = vrot.slane %v840, 7
      %v857 = vsel %vm278, %v855, %v856
      %v858 = vsel %vm278, %v854, %v855
      %v859 = vsel %vm278, %v853, %v854
      %v860 = vsel %vm278, %v856, %v853
      %v861 = vsel %vm270, %v860, -inf
      %v862 = vsel %vm271, %v859, -inf
      %v863 = vsel %vm272, %v858, -inf
      %v864 = vsel %vm273, %v857, -inf
      %v865 = vmax.f32 %v849, %v861
      %v866 = vmax.f32 %v850, %v862
      %v867 = vmax.f32 %v851, %v863
      %v868 = vmax.f32 %v852, %v864
      %v869 = vmax.f32 %v837, %v865
      %v870 = vmax.f32 %v838, %v866
      %v871 = vmax.f32 %v839, %v867
      %v872 = vmax.f32 %v840, %v868
      %v873 = vrot.slane %v837, 2
      %v874 = vrot.slane %v838, 2
      %v875 = vrot.slane %v839, 2
      %v876 = vrot.slane %v840, 2
      %v877 = vsel %vm307, %v875, %v876
      %v878 = vsel %vm307, %v874, %v875
      %v879 = vsel %vm307, %v873, %v874
      %v880 = vsel %vm307, %v876, %v873
      %v881 = vsel %vm299, %v879, -inf
      %v882 = vsel %vm300, %v878, -inf
      %v883 = vsel %vm301, %v877, -inf
      %v884 = vsel %vm302, %v880, -inf
      %v885 = vrot.slane %v837, 6
      %v886 = vrot.slane %v838, 6
      %v887 = vrot.slane %v839, 6
      %v888 = vrot.slane %v840, 6
      %v889 = vsel %vm328, %v887, %v888
      %v890 = vsel %vm328, %v886, %v887
      %v891 = vsel %vm328, %v885, %v886
      %v892 = vsel %vm328, %v888, %v885
      %v893 = vsel %vm320, %v892, -inf
      %v894 = vsel %vm321, %v891, -inf
      %v895 = vsel %vm322, %v890, -inf
      %v896 = vsel %vm323, %v889, -inf
      %v897 = vmax.f32 %v881, %v893
      %v898 = vmax.f32 %v882, %v894
      %v899 = vmax.f32 %v883, %v895
      %v900 = vmax.f32 %v884, %v896
      %v901 = vmax.f32 %v869, %v897
      %v902 = vmax.f32 %v870, %v898
      %v903 = vmax.f32 %v871, %v899
      %v904 = vmax.f32 %v872, %v900
      %vm905 = vcmp.gt.f32.partialorder %v901, 0.0
      %vm906 = vcmp.gt.f32.partialorder %v902, 0.0
      %vm907 = vcmp.gt.f32.partialorder %v903, 0.0
      %vm908 = vcmp.gt.f32.partialorder %v904, 0.0
      %v909 = vsel %vm905, 0.0, %v117
      %v910 = vsel %vm906, 0.0, %v118
      %v911 = vsel %vm907, 0.0, %v119
      %v912 = vsel %vm908, 0.0, %v120
      %913 = vrot.lane.b32.xlu0 %v909, 32
      %v914 = vpop.permute.xlu0 %913
      %v915 = vsel %vm125, %v914, %v909
      %916 = vrot.lane.b32.xlu0 %v910, 32
      %v917 = vpop.permute.xlu0 %916
      %v918 = vsel %vm125, %v917, %v910
      %919 = vrot.lane.b32.xlu0 %v911, 32
      %v920 = vpop.permute.xlu0 %919
      %v921 = vsel %vm125, %v920, %v911
      %922 = vrot.lane.b32.xlu0 %v912, 32
      %v923 = vpop.permute.xlu0 %922
      %v924 = vsel %vm125, %v923, %v912
      %925 = vrot.lane.b32.xlu0 %v915, 32
      %v926 = vpop.permute.xlu0 %925
      %927 = vrot.lane.b32.xlu0 %v918, 32
      %v928 = vpop.permute.xlu0 %927
      %929 = vrot.lane.b32.xlu0 %v921, 32
      %v930 = vpop.permute.xlu0 %929
      %931 = vrot.lane.b32.xlu0 %v924, 32
      %v932 = vpop.permute.xlu0 %931
      %v933 = vsel %vm125, %v926, %v909
      %v934 = vsel %vm125, %v928, %v910
      %v935 = vsel %vm125, %v930, %v911
      %v936 = vsel %vm125, %v932, %v912
      %941 = vrot.lane.b32.xlu0 %v933, 127
      %v942 = vpop.permute.xlu0 %941
      %943 = vrot.lane.b32.xlu0 %v934, 127
      %v944 = vpop.permute.xlu0 %943
      %945 = vrot.lane.b32.xlu0 %v935, 127
      %v946 = vpop.permute.xlu0 %945
      %947 = vrot.lane.b32.xlu0 %v936, 127
      %v948 = vpop.permute.xlu0 %947
      %v953 = vsel %vm124, %v942, -inf
      %v954 = vsel %vm124, %v944, -inf
      %v955 = vsel %vm124, %v946, -inf
      %v956 = vsel %vm124, %v948, -inf
      %957 = vrot.lane.b32.xlu0 %v933, 97
      %v958 = vpop.permute.xlu0 %957
      %959 = vrot.lane.b32.xlu0 %v934, 97
      %v960 = vpop.permute.xlu0 %959
      %961 = vrot.lane.b32.xlu0 %v935, 97
      %v962 = vpop.permute.xlu0 %961
      %963 = vrot.lane.b32.xlu0 %v936, 97
      %v964 = vpop.permute.xlu0 %963
      %v969 = vsel %vm171, %v958, -inf
      %v970 = vsel %vm171, %v960, -inf
      %v971 = vsel %vm171, %v962, -inf
      %v972 = vsel %vm171, %v964, -inf
      %v973 = vmax.f32 %v953, %v969
      %v974 = vmax.f32 %v954, %v970
      %v975 = vmax.f32 %v955, %v971
      %v976 = vmax.f32 %v956, %v972
      %v977 = vmax.f32 %v909, %v973
      %v978 = vmax.f32 %v910, %v974
      %v979 = vmax.f32 %v911, %v975
      %v980 = vmax.f32 %v912, %v976
      %981 = vrot.lane.b32.xlu0 %v933, 126
      %v982 = vpop.permute.xlu0 %981
      %983 = vrot.lane.b32.xlu0 %v934, 126
      %v984 = vpop.permute.xlu0 %983
      %985 = vrot.lane.b32.xlu0 %v935, 126
      %v986 = vpop.permute.xlu0 %985
      %987 = vrot.lane.b32.xlu0 %v936, 126
      %v988 = vpop.permute.xlu0 %987
      %v993 = vsel %vm197, %v982, -inf
      %v994 = vsel %vm197, %v984, -inf
      %v995 = vsel %vm197, %v986, -inf
      %v996 = vsel %vm197, %v988, -inf
      %997 = vrot.lane.b32.xlu0 %v933, 98
      %v998 = vpop.permute.xlu0 %997
      %999 = vrot.lane.b32.xlu0 %v934, 98
      %v1000 = vpop.permute.xlu0 %999
      %1001 = vrot.lane.b32.xlu0 %v935, 98
      %v1002 = vpop.permute.xlu0 %1001
      %1003 = vrot.lane.b32.xlu0 %v936, 98
      %v1004 = vpop.permute.xlu0 %1003
      %v1009 = vsel %vm215, %v998, -inf
      %v1010 = vsel %vm215, %v1000, -inf
      %v1011 = vsel %vm215, %v1002, -inf
      %v1012 = vsel %vm215, %v1004, -inf
      %v1013 = vmax.f32 %v993, %v1009
      %v1014 = vmax.f32 %v994, %v1010
      %v1015 = vmax.f32 %v995, %v1011
      %v1016 = vmax.f32 %v996, %v1012
      %v1017 = vmax.f32 %v977, %v1013
      %v1018 = vmax.f32 %v978, %v1014
      %v1019 = vmax.f32 %v979, %v1015
      %v1020 = vmax.f32 %v980, %v1016
      %v1021 = vrot.slane %v1017, 1
      %v1022 = vrot.slane %v1018, 1
      %v1023 = vrot.slane %v1019, 1
      %v1024 = vrot.slane %v1020, 1
      %v1025 = vsel %vm257, %v1023, %v1024
      %v1026 = vsel %vm257, %v1022, %v1023
      %v1027 = vsel %vm257, %v1021, %v1022
      %v1028 = vsel %vm257, %v1024, %v1021
      %v1029 = vsel %vm249, %v1027, -inf
      %v1030 = vsel %vm250, %v1026, -inf
      %v1031 = vsel %vm251, %v1025, -inf
      %v1032 = vsel %vm252, %v1028, -inf
      %v1033 = vrot.slane %v1017, 7
      %v1034 = vrot.slane %v1018, 7
      %v1035 = vrot.slane %v1019, 7
      %v1036 = vrot.slane %v1020, 7
      %v1037 = vsel %vm278, %v1035, %v1036
      %v1038 = vsel %vm278, %v1034, %v1035
      %v1039 = vsel %vm278, %v1033, %v1034
      %v1040 = vsel %vm278, %v1036, %v1033
      %v1041 = vsel %vm270, %v1040, -inf
      %v1042 = vsel %vm271, %v1039, -inf
      %v1043 = vsel %vm272, %v1038, -inf
      %v1044 = vsel %vm273, %v1037, -inf
      %v1045 = vmax.f32 %v1029, %v1041
      %v1046 = vmax.f32 %v1030, %v1042
      %v1047 = vmax.f32 %v1031, %v1043
      %v1048 = vmax.f32 %v1032, %v1044
      %v1049 = vmax.f32 %v1017, %v1045
      %v1050 = vmax.f32 %v1018, %v1046
      %v1051 = vmax.f32 %v1019, %v1047
      %v1052 = vmax.f32 %v1020, %v1048
      %v1053 = vrot.slane %v1017, 2
      %v1054 = vrot.slane %v1018, 2
      %v1055 = vrot.slane %v1019, 2
      %v1056 = vrot.slane %v1020, 2
      %v1057 = vsel %vm307, %v1055, %v1056
      %v1058 = vsel %vm307, %v1054, %v1055
      %v1059 = vsel %vm307, %v1053, %v1054
      %v1060 = vsel %vm307, %v1056, %v1053
      %v1061 = vsel %vm299, %v1059, -inf
      %v1062 = vsel %vm300, %v1058, -inf
      %v1063 = vsel %vm301, %v1057, -inf
      %v1064 = vsel %vm302, %v1060, -inf
      %v1065 = vrot.slane %v1017, 6
      %v1066 = vrot.slane %v1018, 6
      %v1067 = vrot.slane %v1019, 6
      %v1068 = vrot.slane %v1020, 6
      %v1069 = vsel %vm328, %v1067, %v1068
      %v1070 = vsel %vm328, %v1066, %v1067
      %v1071 = vsel %vm328, %v1065, %v1066
      %v1072 = vsel %vm328, %v1068, %v1065
      %v1073 = vsel %vm320, %v1072, -inf
      %v1074 = vsel %vm321, %v1071, -inf
      %v1075 = vsel %vm322, %v1070, -inf
      %v1076 = vsel %vm323, %v1069, -inf
      %v1077 = vmax.f32 %v1061, %v1073
      %v1078 = vmax.f32 %v1062, %v1074
      %v1079 = vmax.f32 %v1063, %v1075
      %v1080 = vmax.f32 %v1064, %v1076
      %v1081 = vmax.f32 %v1049, %v1077
      %v1082 = vmax.f32 %v1050, %v1078
      %v1083 = vmax.f32 %v1051, %v1079
      %v1084 = vmax.f32 %v1052, %v1080
      %vm1085 = vcmp.eq.f32.partialorder %v909, %v1081
      %vm1086 = vcmp.eq.f32.partialorder %v910, %v1082
      %vm1087 = vcmp.eq.f32.partialorder %v911, %v1083
      %vm1088 = vcmp.eq.f32.partialorder %v912, %v1084
      %vm1089 = vmxor %vm905, 1
      %vm1090 = vmxor %vm906, 1
      %vm1091 = vmxor %vm907, 1
      %vm1092 = vmxor %vm908, 1
      %vm1093 = vmand %vm1085, %vm1089
      %vm1094 = vmand %vm1086, %vm1090
      %vm1095 = vmand %vm1087, %vm1091
      %vm1096 = vmand %vm1088, %vm1092
      %vm1097 = vmor %vm721, %vm1093
      %vm1098 = vmor %vm722, %vm1094
      %vm1099 = vmor %vm723, %vm1095
      %vm1100 = vmor %vm724, %vm1096
      %v1101 = vsel %vm1097, %v117, 0.0
      %v1102 = vsel %vm1098, %v118, 0.0
      %v1103 = vsel %vm1099, %v119, 0.0
      %v1104 = vsel %vm1100, %v120, 0.0
      %vm1105 = vcmp.ge.s32.totalorder %v241, 3
      %vm1106 = vcmp.ge.s32.totalorder %v242, 3
      %vm1107 = vcmp.ge.s32.totalorder %v243, 3
      %vm1108 = vcmp.ge.s32.totalorder %v244, 3
      %vm1109 = vcmp.lt.s32.totalorder %v241, 30
      %vm1110 = vcmp.lt.s32.totalorder %v242, 30
      %vm1111 = vcmp.lt.s32.totalorder %v243, 30
      %vm1112 = vcmp.lt.s32.totalorder %v244, 30
      %vm1113 = vmand %vm1105, %vm1109
      %vm1114 = vmand %vm1106, %vm1110
      %vm1115 = vmand %vm1107, %vm1111
      %vm1116 = vmand %vm1108, %vm1112
      %vm1117 = vcmp.ge.s32.totalorder %v122, 3
      %vm1118 = vmand %vm1113, %vm1117
      %vm1119 = vmand %vm1114, %vm1117
      %vm1120 = vmand %vm1115, %vm1117
      %vm1121 = vmand %vm1116, %vm1117
      %vm1122 = vcmp.lt.s32.totalorder %v122, 30
      %vm1123 = vmand %vm1118, %vm1122
      %vm1124 = vmand %vm1119, %vm1122
      %vm1125 = vmand %vm1120, %vm1122
      %vm1126 = vmand %vm1121, %vm1122
      %v1127 = vsel %vm1123, %v1101, 0.0
      %v1128 = vsel %vm1124, %v1102, 0.0
      %v1129 = vsel %vm1125, %v1103, 0.0
      %v1130 = vsel %vm1126, %v1104, 0.0
      %vm1131 = vcmask 261120
      %1132 = vst.msk [vmem:[%s116] sm:$0xff] %vm1131, %v1127
      %1133 = vst.msk [vmem:[%s116 + $0x8] sm:$0xff] %vm1131, %v1128
      %1134 = vst.msk [vmem:[%s116 + $0x10] sm:$0xff] %vm1131, %v1129
      %1135 = vst.msk [vmem:[%s116 + $0x18] sm:$0xff] %vm1131, %v1130
      %p1136 = scmp.lt.s32.totalorder %s12, 1
      %s1137 = scalar_select %p1136, %s12, 1
      %s1138 = smul.addr %s1137, 4
      %s1139 = smul.addr %s1138, 8
      %s1140 = scalar_lea.vmem %s1, %s1139
      // Predicated region
      $region25: #{dkd_forward.2} parent=23 // pred_check
        %p1141 = pneg %p56
      $region26: #{dkd_forward.2} parent=23 // pred_check_branch
        %1143 = sbr.rel (%p1141) target = $region28
      $region27: #{dkd_forward.2} parent=23 // pred_region
        _
      $region28: #{dkd_forward.2} parent=23 // pred_fallthru
        _
    $region24: #{dkd_forward.2} parent=5 // pred_fallthru
      _
    %p1144 = scmp.le.s32.totalorder 2, %s7
    // Predicated region
    $region29: #{dkd_forward.2} parent=5 // pred_check
      %p1145 = pneg %p1144
    $region30: #{dkd_forward.2} parent=5 // pred_check_branch
      %1147 = sbr.rel (%p1145) target = $region32
    $region31: #{dkd_forward.2} parent=5 // pred_region
      %s1148 = ssub.s32 %s7, 2
      // Predicated region
      $region33: #{dkd_forward.2} parent=31 // pred_check
        %p1149 = pneg %p62
      $region34: #{dkd_forward.2} parent=31 // pred_check_branch
        %1151 = sbr.rel (%p1149) target = $region36
      $region35: #{dkd_forward.2} parent=31 // pred_region
        %p1152 = scmp.lt.s32.totalorder %s13, 1
        %s1153 = scalar_select %p1152, %s13, 1
        %s1154 = smul.addr %s1153, 4
        %s1155 = smul.addr %s1154, 8
        %s1156 = scalar_lea.vmem %s1, %s1155
      $region36: #{dkd_forward.2} parent=31 // pred_fallthru
        _
    $region32: #{dkd_forward.2} parent=5 // pred_fallthru
      _
  $region6: #{dkd_forward.2} parent=0 // loop_footer
    %s11 = sadd.s32 1, %s7
  $region7: #{dkd_forward.2} parent=0 // loop_footer_branch
    %6 = sbr.rel target = $region3
  $region8: #{dkd_forward.2} parent=0 // loop_exit
    _

</llo_original>
